<compile_context>
chip_gen: v6e
topology: v6e:2x2x1
jax: 0.10.0
libtpu: 0.0.40
codegen_flags: <defaults>
</compile_context>

<pallas_src>
import numpy as np
import jax
import jax.numpy as jnp
from jax import lax
from jax.experimental import pallas as pl
from jax.experimental.pallas import tpu as pltpu

# LaneGcnLoss default hyper-parameters
NUM_MODS = 6
NUM_PRED_POINTS = 30
CLS_TH = 2.0
CLS_IGNORE = 0.2
MGN = 0.2
CLS_COEF = 1.0
REG_COEF = 1.0

# TODO(synk): the calculate_angular_loss=True branch (Python loops over rows, host-side
# integer-degree angle averaging via math.atan2/int()) has no clean vectorized Pallas
# equivalent and is not implemented (module default is False).


def _smooth_l1(d):
    # nn.SmoothL1Loss with default beta=1.0, per-element
    a = jnp.abs(d)
    return jnp.where(a < 1.0, 0.5 * d * d, a - 0.5)


def lanegcn_loss_kernel(cls_ref, reg_ref, gt_ref, has_ref, out_ref):
    """Row axis N is the lane (last) dimension of every ref.

    cls_ref [M, BN], reg_ref [2, M, T, BN], gt_ref [2, T, BN], has_ref [T, BN],
    out_ref [4, BN]: rows = (cls_loss partial, num_cls partial, reg_loss partial,
    num_reg partial) for this tile of rows.
    """
    has = has_ref[...]           # [T, BN] float 0/1
    gtx = gt_ref[0]              # [T, BN]
    gty = gt_ref[1]
    regx = reg_ref[0]            # [M, T, BN]
    regy = reg_ref[1]
    cls_v = cls_ref[...]         # [M, BN]

    T, bn = has.shape
    M = cls_v.shape[0]

    # last = has + 0.1 * arange(T) / T ; max/argmax over T (argmax via exact one-hot,
    # values are tie-free by construction so the one-hot gather equals the PyTorch gather).
    it = lax.broadcasted_iota(jnp.int32, (T, bn), 0).astype(jnp.float32)
    last = has + 0.1 * it / float(T)
    max_last = jnp.max(last, axis=0, keepdims=True)            # [1, BN]
    validf = (max_last > 1.0).astype(jnp.float32)              # row filter mask
    oh_last = (last == max_last).astype(jnp.float32)           # [T, BN] one-hot of last_idcs

    # gather endpoint of gt and of every mode at last_idcs (leading-axis VPU reductions)
    end_gt_x = jnp.sum(oh_last * gtx, axis=0, keepdims=True)   # [1, BN]
    end_gt_y = jnp.sum(oh_last * gty, axis=0, keepdims=True)
    end_reg_x = jnp.sum(oh_last[None, :, :] * regx, axis=1)    # [M, BN]
    end_reg_y = jnp.sum(oh_last[None, :, :] * regy, axis=1)

    dx = end_reg_x - end_gt_x
    dy = end_reg_y - end_gt_y
    dist = jnp.sqrt(dx * dx + dy * dy)                         # [M, BN]

    # min over modes; first-occurrence argmin via iota trick (matches torch .min(1))
    min_dist = jnp.min(dist, axis=0, keepdims=True)            # [1, BN]
    im = lax.broadcasted_iota(jnp.int32, (M, bn), 0).astype(jnp.float32)
    cand = jnp.where(dist == min_dist, im, float(M))
    min_idx = jnp.min(cand, axis=0, keepdims=True)
    oh_min = (im == min_idx).astype(jnp.float32)               # [M, BN] one-hot of min_idcs

    # classification (max-margin) loss
    sel_cls = jnp.sum(oh_min * cls_v, axis=0, keepdims=True)   # cls of best mode [1, BN]
    mgn = sel_cls - cls_v                                      # [M, BN]
    mask = ((min_dist < CLS_TH)
            & ((dist - min_dist) > CLS_IGNORE)
            & (mgn < MGN)
            & (validf > 0.0))
    maskf = mask.astype(jnp.float32)
    cls_term = jnp.sum(maskf * (MGN - mgn), axis=0, keepdims=True)   # [1, BN]
    n_cls = jnp.sum(maskf, axis=0, keepdims=True)                    # [1, BN]

    # regression (smooth-L1, sum) loss on the best mode, masked by has_preds
    sel_reg_x = jnp.sum(oh_min[:, None, :] * regx, axis=0)     # [T, BN]
    sel_reg_y = jnp.sum(oh_min[:, None, :] * regy, axis=0)
    w = has * validf                                           # [T, BN]
    reg_term = jnp.sum((_smooth_l1(sel_reg_x - gtx) + _smooth_l1(sel_reg_y - gty)) * w,
                       axis=0, keepdims=True)                  # [1, BN]
    n_reg = jnp.sum(w, axis=0, keepdims=True)                  # [1, BN]

    # per-tile lane-dense partial sums; reduced to scalars in the wrapper
    out_ref[0:1, :] = cls_term
    out_ref[1:2, :] = n_cls
    out_ref[2:3, :] = reg_term
    out_ref[3:4, :] = n_reg


def lanegcn_loss(cls_cat, reg_cat, gt_cat, has_cat, *, block_n=512):
    """cls_cat [N,M] f32, reg_cat [N,M,T,2] f32, gt_cat [N,T,2] f32, has_cat [N,T] bool.

    block_n: rows per grid step (lane tile), must be a multiple of 128. 512 keeps the
    per-step working set (~1.5 MB double-buffered reg tile) well inside even v5e's
    16 MiB default scoped VMEM while being large enough to amortize per-step overhead.
    """
    N, M = cls_cat.shape
    T = gt_cat.shape[1]
    n_pad = ((N + block_n - 1) // block_n) * block_n
    pad = n_pad - N

    def prep(x, perm):
        # single fused pad+transpose pass per array; N ends up on the last (lane) axis
        xt = jnp.transpose(x.astype(jnp.float32), perm)
        return jnp.pad(xt, [(0, 0)] * (xt.ndim - 1) + [(0, pad)])

    cls_t = prep(cls_cat, (1, 0))          # [M, Np]
    reg_t = prep(reg_cat, (3, 1, 2, 0))    # [2, M, T, Np]  (x/y split folded in)
    gt_t = prep(gt_cat, (2, 1, 0))         # [2, T, Np]
    has_t = prep(has_cat, (1, 0))          # [T, Np]

    grid = (n_pad // block_n,)
    out = pl.pallas_call(
        lanegcn_loss_kernel,
        out_shape=jax.ShapeDtypeStruct((4, n_pad), jnp.float32),
        grid=grid,
        in_specs=[
            pl.BlockSpec((M, block_n), lambda i: (0, i)),
            pl.BlockSpec((2, M, T, block_n), lambda i: (0, 0, 0, i)),
            pl.BlockSpec((2, T, block_n), lambda i: (0, 0, i)),
            pl.BlockSpec((T, block_n), lambda i: (0, i)),
        ],
        out_specs=pl.BlockSpec((4, block_n), lambda i: (0, i)),
        compiler_params=pltpu.CompilerParams(dimension_semantics=("parallel",)),
    )(cls_t, reg_t, gt_t, has_t)

    sums = jnp.sum(out, axis=1)            # [4] final reduction in the wrapper
    cls_loss = CLS_COEF * sums[0]
    num_cls = sums[1]
    reg_loss = REG_COEF * sums[2]
    num_reg = sums[3]
    return cls_loss / (num_cls + 1e-10) + reg_loss / (num_reg + 1e-10)


def lanegcn_loss_ref(cls_cat, reg_cat, gt_cat, has_cat):
    """Plain-JAX reference mirroring the PyTorch forward (training=True)."""
    N, M = cls_cat.shape
    T = gt_cat.shape[1]
    has = has_cat.astype(jnp.float32)
    last = has + 0.1 * jnp.arange(T, dtype=jnp.float32) / float(T)
    max_last = jnp.max(last, axis=1)
    last_idcs = jnp.argmax(last, axis=1)
    valid = max_last > 1.0
    rows = jnp.arange(N)

    end_gt = gt_cat[rows, last_idcs]                 # [N,2]
    end_reg = reg_cat[rows, :, last_idcs]            # [N,M,2]
    dist = jnp.sqrt(jnp.sum((end_reg - end_gt[:, None, :]) ** 2, axis=-1))
    min_dist = jnp.min(dist, axis=1)
    min_idcs = jnp.argmin(dist, axis=1)

    mgn = cls_cat[rows, min_idcs][:, None] - cls_cat
    mask = ((min_dist[:, None] < CLS_TH)
            & ((dist - min_dist[:, None]) > CLS_IGNORE)
            & (mgn < MGN)
            & valid[:, None])
    cls_loss = CLS_COEF * jnp.sum(jnp.where(mask, MGN - mgn, 0.0))
    num_cls = jnp.sum(mask).astype(jnp.float32)

    sel_reg = reg_cat[rows, min_idcs]                # [N,T,2]
    d = sel_reg - gt_cat
    a = jnp.abs(d)
    sl1 = jnp.where(a < 1.0, 0.5 * d * d, a - 0.5)
    w = (has * valid[:, None].astype(jnp.float32))[:, :, None]
    reg_loss = REG_COEF * jnp.sum(sl1 * w)
    num_reg = jnp.sum(has * valid[:, None].astype(jnp.float32))

    return cls_loss / (num_cls + 1e-10) + reg_loss / (num_reg + 1e-10)


if __name__ == "__main__":
    key = jax.random.PRNGKey(0)
    M, T = NUM_MODS, NUM_PRED_POINTS
    batch_sizes = [70, 90]   # list-of-tensors input, concatenated along rows as in the module

    cls_list, reg_list, gt_list, has_list = [], [], [], []
    for ni in batch_sizes:
        key, k1, k2, k3, k4 = jax.random.split(key, 5)
        gt = 5.0 * jax.random.normal(k1, (ni, T, 2), jnp.float32)
        lengths = jax.random.randint(k2, (ni,), 0, T + 1)   # includes some invalid rows
        has = jnp.arange(T)[None, :] < lengths[:, None]
        reg = gt[:, None, :, :] + jax.random.normal(k3, (ni, M, T, 2), jnp.float32)
        cls_ = jax.random.normal(k4, (ni, M), jnp.float32)
        gt_list.append(gt)
        has_list.append(has)
        reg_list.append(reg)
        cls_list.append(cls_)

    cls_cat = jnp.concatenate(cls_list, 0)
    reg_cat = jnp.concatenate(reg_list, 0)
    gt_cat = jnp.concatenate(gt_list, 0)
    has_cat = jnp.concatenate(has_list, 0)

    # block_n=128 here so the small test exercises a multi-tile (parallel) grid;
    # production default is 512.
    loss = jax.block_until_ready(lanegcn_loss(cls_cat, reg_cat, gt_cat, has_cat, block_n=128))
    loss_ref = jax.block_until_ready(lanegcn_loss_ref(cls_cat, reg_cat, gt_cat, has_cat))

    if not np.allclose(np.asarray(loss), np.asarray(loss_ref), rtol=1e-3, atol=1e-3):
        raise AssertionError(f"mismatch: pallas={float(loss)} ref={float(loss_ref)}")
    print("KERNEL_OK")
</pallas_src>

<mosaic_0001>
module attributes {stable_mosaic.version = 11 : i64} {
  func.func @lanegcn_loss_kernel(%arg0: i32, %arg1: memref<6x128xf32, #tpu.memory_space<vmem>>, %arg2: memref<2x6x30x128xf32, #tpu.memory_space<vmem>>, %arg3: memref<2x30x128xf32, #tpu.memory_space<vmem>>, %arg4: memref<30x128xf32, #tpu.memory_space<vmem>>, %arg5: memref<4x128xf32, #tpu.memory_space<vmem>>) attributes {dimension_semantics = [#tpu.dimension_semantics<parallel>], iteration_bounds = array<i64: 2>, scalar_prefetch = 0 : i64, scratch_operands = 0 : i64, tpu.core_type = #tpu.core_type<tc>, window_params = [{transform_indices = @transform_0, window_bounds = array<i64: 6, 128>}, {transform_indices = @transform_1, window_bounds = array<i64: 2, 6, 30, 128>}, {transform_indices = @transform_2, window_bounds = array<i64: 2, 30, 128>}, {transform_indices = @transform_3, window_bounds = array<i64: 30, 128>}, {transform_indices = @transform_4, window_bounds = array<i64: 4, 128>}]} {
    %c0 = arith.constant 0 : index
    %c0_0 = arith.constant 0 : index
    %0 = vector.load %arg4[%c0, %c0_0] : memref<30x128xf32, #tpu.memory_space<vmem>>, vector<30x128xf32>
    %c0_1 = arith.constant 0 : index
    %c0_2 = arith.constant 0 : index
    %c0_3 = arith.constant 0 : index
    %1 = vector.load %arg3[%c0_1, %c0_2, %c0_3] : memref<2x30x128xf32, #tpu.memory_space<vmem>>, vector<1x30x128xf32>
    %2 = vector.shape_cast %1 : vector<1x30x128xf32> to vector<30x128xf32>
    %c1 = arith.constant 1 : index
    %c0_4 = arith.constant 0 : index
    %c0_5 = arith.constant 0 : index
    %3 = vector.load %arg3[%c1, %c0_4, %c0_5] : memref<2x30x128xf32, #tpu.memory_space<vmem>>, vector<1x30x128xf32>
    %4 = vector.shape_cast %3 : vector<1x30x128xf32> to vector<30x128xf32>
    %c0_6 = arith.constant 0 : index
    %c0_7 = arith.constant 0 : index
    %c0_8 = arith.constant 0 : index
    %c0_9 = arith.constant 0 : index
    %5 = vector.load %arg2[%c0_6, %c0_7, %c0_8, %c0_9] : memref<2x6x30x128xf32, #tpu.memory_space<vmem>>, vector<1x6x30x128xf32>
    %6 = vector.shape_cast %5 : vector<1x6x30x128xf32> to vector<6x30x128xf32>
    %c1_10 = arith.constant 1 : index
    %c0_11 = arith.constant 0 : index
    %c0_12 = arith.constant 0 : index
    %c0_13 = arith.constant 0 : index
    %7 = vector.load %arg2[%c1_10, %c0_11, %c0_12, %c0_13] : memref<2x6x30x128xf32, #tpu.memory_space<vmem>>, vector<1x6x30x128xf32>
    %8 = vector.shape_cast %7 : vector<1x6x30x128xf32> to vector<6x30x128xf32>
    %c0_14 = arith.constant 0 : index
    %c0_15 = arith.constant 0 : index
    %9 = vector.load %arg1[%c0_14, %c0_15] : memref<6x128xf32, #tpu.memory_space<vmem>>, vector<6x128xf32>
    %10 = tpu.iota {dimensions = array<i32: 0>} : vector<30x128xi32>
    %11 = arith.sitofp %10 : vector<30x128xi32> to vector<30x128xf32>
    %cst = arith.constant 1.000000e-01 : f32
    %12 = vector.broadcast %cst : f32 to vector<30x128xf32>
    %13 = arith.mulf %12, %11 : vector<30x128xf32>
    %cst_16 = arith.constant 3.000000e+01 : f32
    %14 = vector.broadcast %cst_16 : f32 to vector<30x128xf32>
    %15 = arith.divf %13, %14 : vector<30x128xf32>
    %16 = arith.addf %0, %15 : vector<30x128xf32>
    %cst_17 = arith.constant dense<0xFF800000> : vector<128xf32>
    %17 = vector.multi_reduction <maximumf>, %16, %cst_17 [0] : vector<30x128xf32> to vector<128xf32>
    %18 = vector.shape_cast %17 : vector<128xf32> to vector<1x128xf32>
    %cst_18 = arith.constant 1.000000e+00 : f32
    %19 = vector.broadcast %cst_18 : f32 to vector<1x128xf32>
    %20 = arith.cmpf ogt, %18, %19 : vector<1x128xf32>
    %21 = arith.extui %20 : vector<1x128xi1> to vector<1x128xi32>
    %22 = arith.sitofp %21 : vector<1x128xi32> to vector<1x128xf32>
    %23 = vector.broadcast %18 : vector<1x128xf32> to vector<30x128xf32>
    %24 = arith.cmpf oeq, %16, %23 : vector<30x128xf32>
    %25 = arith.extui %24 : vector<30x128xi1> to vector<30x128xi32>
    %26 = arith.sitofp %25 : vector<30x128xi32> to vector<30x128xf32>
    %27 = arith.mulf %26, %2 : vector<30x128xf32>
    %cst_19 = arith.constant dense<0.000000e+00> : vector<128xf32>
    %28 = vector.multi_reduction <add>, %27, %cst_19 [0] : vector<30x128xf32> to vector<128xf32>
    %29 = vector.shape_cast %28 : vector<128xf32> to vector<1x128xf32>
    %30 = arith.mulf %26, %4 : vector<30x128xf32>
    %cst_20 = arith.constant dense<0.000000e+00> : vector<128xf32>
    %31 = vector.multi_reduction <add>, %30, %cst_20 [0] : vector<30x128xf32> to vector<128xf32>
    %32 = vector.shape_cast %31 : vector<128xf32> to vector<1x128xf32>
    %33 = vector.shape_cast %26 : vector<30x128xf32> to vector<1x30x128xf32>
    %34 = vector.broadcast %33 : vector<1x30x128xf32> to vector<6x30x128xf32>
    %35 = arith.mulf %34, %6 : vector<6x30x128xf32>
    %cst_21 = arith.constant dense<0.000000e+00> : vector<6x128xf32>
    %36 = vector.multi_reduction <add>, %35, %cst_21 [1] : vector<6x30x128xf32> to vector<6x128xf32>
    %37 = vector.shape_cast %26 : vector<30x128xf32> to vector<1x30x128xf32>
    %38 = vector.broadcast %37 : vector<1x30x128xf32> to vector<6x30x128xf32>
    %39 = arith.mulf %38, %8 : vector<6x30x128xf32>
    %cst_22 = arith.constant dense<0.000000e+00> : vector<6x128xf32>
    %40 = vector.multi_reduction <add>, %39, %cst_22 [1] : vector<6x30x128xf32> to vector<6x128xf32>
    %41 = vector.broadcast %29 : vector<1x128xf32> to vector<6x128xf32>
    %42 = arith.subf %36, %41 : vector<6x128xf32>
    %43 = vector.broadcast %32 : vector<1x128xf32> to vector<6x128xf32>
    %44 = arith.subf %40, %43 : vector<6x128xf32>
    %45 = arith.mulf %42, %42 : vector<6x128xf32>
    %46 = arith.mulf %44, %44 : vector<6x128xf32>
    %47 = arith.addf %45, %46 : vector<6x128xf32>
    %48 = math.sqrt %47 : vector<6x128xf32>
    %cst_23 = arith.constant dense<0x7F800000> : vector<128xf32>
    %49 = vector.multi_reduction <minimumf>, %48, %cst_23 [0] : vector<6x128xf32> to vector<128xf32>
    %50 = vector.shape_cast %49 : vector<128xf32> to vector<1x128xf32>
    %51 = tpu.iota {dimensions = array<i32: 0>} : vector<6x128xi32>
    %52 = arith.sitofp %51 : vector<6x128xi32> to vector<6x128xf32>
    %53 = vector.broadcast %50 : vector<1x128xf32> to vector<6x128xf32>
    %54 = arith.cmpf oeq, %48, %53 : vector<6x128xf32>
    %cst_24 = arith.constant 6.000000e+00 : f32
    %55 = vector.broadcast %cst_24 : f32 to vector<6x128xf32>
    %56 = arith.select %54, %52, %55 : vector<6x128xi1>, vector<6x128xf32>
    %cst_25 = arith.constant dense<0x7F800000> : vector<128xf32>
    %57 = vector.multi_reduction <minimumf>, %56, %cst_25 [0] : vector<6x128xf32> to vector<128xf32>
    %58 = vector.shape_cast %57 : vector<128xf32> to vector<1x128xf32>
    %59 = vector.broadcast %58 : vector<1x128xf32> to vector<6x128xf32>
    %60 = arith.cmpf oeq, %52, %59 : vector<6x128xf32>
    %61 = arith.extui %60 : vector<6x128xi1> to vector<6x128xi32>
    %62 = arith.sitofp %61 : vector<6x128xi32> to vector<6x128xf32>
    %63 = arith.mulf %62, %9 : vector<6x128xf32>
    %cst_26 = arith.constant dense<0.000000e+00> : vector<128xf32>
    %64 = vector.multi_reduction <add>, %63, %cst_26 [0] : vector<6x128xf32> to vector<128xf32>
    %65 = vector.shape_cast %64 : vector<128xf32> to vector<1x128xf32>
    %66 = vector.broadcast %65 : vector<1x128xf32> to vector<6x128xf32>
    %67 = arith.subf %66, %9 : vector<6x128xf32>
    %cst_27 = arith.constant 2.000000e+00 : f32
    %68 = vector.broadcast %cst_27 : f32 to vector<1x128xf32>
    %69 = arith.cmpf olt, %50, %68 : vector<1x128xf32>
    %70 = vector.broadcast %50 : vector<1x128xf32> to vector<6x128xf32>
    %71 = arith.subf %48, %70 : vector<6x128xf32>
    %cst_28 = arith.constant 2.000000e-01 : f32
    %72 = vector.broadcast %cst_28 : f32 to vector<6x128xf32>
    %73 = arith.cmpf ogt, %71, %72 : vector<6x128xf32>
    %74 = vector.broadcast %69 : vector<1x128xi1> to vector<6x128xi1>
    %75 = arith.andi %74, %73 : vector<6x128xi1>
    %cst_29 = arith.constant 2.000000e-01 : f32
    %76 = vector.broadcast %cst_29 : f32 to vector<6x128xf32>
    %77 = arith.cmpf olt, %67, %76 : vector<6x128xf32>
    %78 = arith.andi %75, %77 : vector<6x128xi1>
    %cst_30 = arith.constant 0.000000e+00 : f32
    %79 = vector.broadcast %cst_30 : f32 to vector<1x128xf32>
    %80 = arith.cmpf ogt, %22, %79 : vector<1x128xf32>
    %81 = vector.broadcast %80 : vector<1x128xi1> to vector<6x128xi1>
    %82 = arith.andi %78, %81 : vector<6x128xi1>
    %83 = arith.extui %82 : vector<6x128xi1> to vector<6x128xi32>
    %84 = arith.sitofp %83 : vector<6x128xi32> to vector<6x128xf32>
    %cst_31 = arith.constant 2.000000e-01 : f32
    %85 = vector.broadcast %cst_31 : f32 to vector<6x128xf32>
    %86 = arith.subf %85, %67 : vector<6x128xf32>
    %87 = arith.mulf %84, %86 : vector<6x128xf32>
    %cst_32 = arith.constant dense<0.000000e+00> : vector<128xf32>
    %88 = vector.multi_reduction <add>, %87, %cst_32 [0] : vector<6x128xf32> to vector<128xf32>
    %89 = vector.shape_cast %88 : vector<128xf32> to vector<1x128xf32>
    %cst_33 = arith.constant dense<0.000000e+00> : vector<128xf32>
    %90 = vector.multi_reduction <add>, %84, %cst_33 [0] : vector<6x128xf32> to vector<128xf32>
    %91 = vector.shape_cast %90 : vector<128xf32> to vector<1x128xf32>
    %92 = vector.shape_cast %62 : vector<6x128xf32> to vector<6x1x128xf32>
    %93 = vector.broadcast %92 : vector<6x1x128xf32> to vector<6x30x128xf32>
    %94 = arith.mulf %93, %6 : vector<6x30x128xf32>
    %cst_34 = arith.constant dense<0.000000e+00> : vector<30x128xf32>
    %95 = vector.multi_reduction <add>, %94, %cst_34 [0] : vector<6x30x128xf32> to vector<30x128xf32>
    %96 = vector.shape_cast %62 : vector<6x128xf32> to vector<6x1x128xf32>
    %97 = vector.broadcast %96 : vector<6x1x128xf32> to vector<6x30x128xf32>
    %98 = arith.mulf %97, %8 : vector<6x30x128xf32>
    %cst_35 = arith.constant dense<0.000000e+00> : vector<30x128xf32>
    %99 = vector.multi_reduction <add>, %98, %cst_35 [0] : vector<6x30x128xf32> to vector<30x128xf32>
    %100 = vector.broadcast %22 : vector<1x128xf32> to vector<30x128xf32>
    %101 = arith.mulf %0, %100 : vector<30x128xf32>
    %102 = arith.subf %95, %2 : vector<30x128xf32>
    %103 = math.absf %102 : vector<30x128xf32>
    %cst_36 = arith.constant 1.000000e+00 : f32
    %104 = vector.broadcast %cst_36 : f32 to vector<30x128xf32>
    %105 = arith.cmpf olt, %103, %104 : vector<30x128xf32>
    %cst_37 = arith.constant 5.000000e-01 : f32
    %106 = vector.broadcast %cst_37 : f32 to vector<30x128xf32>
    %107 = arith.mulf %106, %102 : vector<30x128xf32>
    %108 = arith.mulf %107, %102 : vector<30x128xf32>
    %cst_38 = arith.constant 5.000000e-01 : f32
    %109 = vector.broadcast %cst_38 : f32 to vector<30x128xf32>
    %110 = arith.subf %103, %109 : vector<30x128xf32>
    %111 = arith.select %105, %108, %110 : vector<30x128xi1>, vector<30x128xf32>
    %112 = arith.subf %99, %4 : vector<30x128xf32>
    %113 = math.absf %112 : vector<30x128xf32>
    %cst_39 = arith.constant 1.000000e+00 : f32
    %114 = vector.broadcast %cst_39 : f32 to vector<30x128xf32>
    %115 = arith.cmpf olt, %113, %114 : vector<30x128xf32>
    %cst_40 = arith.constant 5.000000e-01 : f32
    %116 = vector.broadcast %cst_40 : f32 to vector<30x128xf32>
    %117 = arith.mulf %116, %112 : vector<30x128xf32>
    %118 = arith.mulf %117, %112 : vector<30x128xf32>
    %cst_41 = arith.constant 5.000000e-01 : f32
    %119 = vector.broadcast %cst_41 : f32 to vector<30x128xf32>
    %120 = arith.subf %113, %119 : vector<30x128xf32>
    %121 = arith.select %115, %118, %120 : vector<30x128xi1>, vector<30x128xf32>
    %122 = arith.addf %111, %121 : vector<30x128xf32>
    %123 = arith.mulf %122, %101 : vector<30x128xf32>
    %cst_42 = arith.constant dense<0.000000e+00> : vector<128xf32>
    %124 = vector.multi_reduction <add>, %123, %cst_42 [0] : vector<30x128xf32> to vector<128xf32>
    %125 = vector.shape_cast %124 : vector<128xf32> to vector<1x128xf32>
    %cst_43 = arith.constant dense<0.000000e+00> : vector<128xf32>
    %126 = vector.multi_reduction <add>, %101, %cst_43 [0] : vector<30x128xf32> to vector<128xf32>
    %127 = vector.shape_cast %126 : vector<128xf32> to vector<1x128xf32>
    %c0_44 = arith.constant 0 : index
    %c0_45 = arith.constant 0 : index
    %128 = vector.load %arg5[%c0_44, %c0_45] : memref<4x128xf32, #tpu.memory_space<vmem>>, vector<1x128xf32>
    tpu.vector_store %arg5[%c0_44, %c0_45], %89 {strides = array<i32>} : memref<4x128xf32, #tpu.memory_space<vmem>>, vector<1x128xf32>,
    %c1_46 = arith.constant 1 : index
    %c0_47 = arith.constant 0 : index
    %129 = vector.load %arg5[%c1_46, %c0_47] : memref<4x128xf32, #tpu.memory_space<vmem>>, vector<1x128xf32>
    tpu.vector_store %arg5[%c1_46, %c0_47], %91 {strides = array<i32>} : memref<4x128xf32, #tpu.memory_space<vmem>>, vector<1x128xf32>,
    %c2 = arith.constant 2 : index
    %c0_48 = arith.constant 0 : index
    %130 = vector.load %arg5[%c2, %c0_48] : memref<4x128xf32, #tpu.memory_space<vmem>>, vector<1x128xf32>
    tpu.vector_store %arg5[%c2, %c0_48], %125 {strides = array<i32>} : memref<4x128xf32, #tpu.memory_space<vmem>>, vector<1x128xf32>,
    %c3 = arith.constant 3 : index
    %c0_49 = arith.constant 0 : index
    %131 = vector.load %arg5[%c3, %c0_49] : memref<4x128xf32, #tpu.memory_space<vmem>>, vector<1x128xf32>
    tpu.vector_store %arg5[%c3, %c0_49], %127 {strides = array<i32>} : memref<4x128xf32, #tpu.memory_space<vmem>>, vector<1x128xf32>,
    return
  }
  func.func @transform_0(%arg0: i32) -> (i32, i32) {
    %c0_i32 = arith.constant 0 : i32
    %c0_i32_0 = arith.constant 0 : i32
    return %c0_i32, %arg0 : i32, i32
  }
  func.func @transform_1(%arg0: i32) -> (i32, i32, i32, i32) {
    %c0_i32 = arith.constant 0 : i32
    %c0_i32_0 = arith.constant 0 : i32
    %c0_i32_1 = arith.constant 0 : i32
    %c0_i32_2 = arith.constant 0 : i32
    return %c0_i32, %c0_i32_0, %c0_i32_1, %arg0 : i32, i32, i32, i32
  }
  func.func @transform_2(%arg0: i32) -> (i32, i32, i32) {
    %c0_i32 = arith.constant 0 : i32
    %c0_i32_0 = arith.constant 0 : i32
    %c0_i32_1 = arith.constant 0 : i32
    return %c0_i32, %c0_i32_0, %arg0 : i32, i32, i32
  }
  func.func @transform_3(%arg0: i32) -> (i32, i32) {
    %c0_i32 = arith.constant 0 : i32
    %c0_i32_0 = arith.constant 0 : i32
    return %c0_i32, %arg0 : i32, i32
  }
  func.func @transform_4(%arg0: i32) -> (i32, i32) {
    %c0_i32 = arith.constant 0 : i32
    %c0_i32_0 = arith.constant 0 : i32
    return %c0_i32, %arg0 : i32, i32
  }
}

</mosaic_0001>

<llo_original>
// kernel: tpu_custom_call.1
$region0: #{tpu_custom_call.1}
  #allocation0 [shape = 'u32[]', space=smem, size = 0x4, offset = 0x4, fixed_abs, tag = 'smem constant byte address 0x4 - core index']
  #allocation1 [shape = 'u32[144,128]{1,0:T(1,128)}', space=vmem, size = 0x12000, scoped, tag = 'internal scratch']
  %s0 = inlined_call_operand.vmem [shape: f32[6,256], index: 0, kind: input, shape index: {}]
  %s1 = inlined_call_operand.vmem [shape: f32[2,6,30,256], index: 1, kind: input, shape index: {}]
  %s2 = inlined_call_operand.vmem [shape: f32[2,30,256], index: 2, kind: input, shape index: {}]
  %s3 = inlined_call_operand.vmem [shape: f32[30,256], index: 3, kind: input, shape index: {}]
  %s4 = inlined_call_operand.hbm [shape: f32[4,256], index: 4, kind: output, shape index: {}]
  %s5 = sld [smem:[#allocation0]]
  $region163: #{tpu_custom_call.1} parent=0
    _
  %s7 = ssub.s32 1, %s5
  %s8 = scalar_select 0, %s7, %s5
  $region1: #{tpu_custom_call.1} parent=0
    #allocation2 [shape = 'u8[393216]{0}', space=vmem, size = 0x60000, scoped, tag = 'input window, operand 1']
    #allocation3 [shape = 'u8[65536]{0}', space=vmem, size = 0x10000, scoped, tag = 'input window, operand 2']
    #allocation4 [shape = 'u8[32768]{0}', space=vmem, size = 0x8000, scoped, tag = 'input window, operand 3']
    #allocation5 [shape = 'u8[4096]{0}', space=vmem, size = 0x1000, scoped, tag = 'output window, operand 0']
    #allocation6 [shape = 's32[2]{0}', space=sflag, size = 0x8, scoped, tag = 'scoped memory for tpu_custom_call.1']
    %9 = vsyncpa [#allocation6], 0
    %s10 = scalar_lea.sflag [#allocation6], 1
    %11 = vsyncpa %s10, 0
    loop: start=0, step=1, limit=4
    $region2: #{tpu_custom_call.1} parent=1 // loop_pre_header
      _
    $region3: #{tpu_custom_call.1} parent=1 // loop_header
      %s13 = sphi 0, %s17
      %p14 = scmp.ge.s32.totalorder %s13, 4
      %s23 = sphi 0, %s25
      %s26 = sphi 0, %s23
      %s27 = sphi 0, %s26
      %s43 = sphi 0, %s27
      %s49 = sphi 0, %s51
      %s52 = sphi 0, %s49
      %s53 = sphi 0, %s52
      %s69 = sphi 0, %s53
      %s75 = sphi 0, %s77
      %s78 = sphi 0, %s75
      %s79 = sphi 0, %s78
      %s95 = sphi 0, %s79
      %s101 = sphi 0, %s103
      %s104 = sphi 0, %s101
      %s105 = sphi 0, %s104
      %s121 = sphi 0, %s105
      %s127 = sphi 0, %s129
      %s130 = sphi 0, %s127
      %s131 = sphi 0, %s130
      %s147 = sphi 0, %s131
    $region4: #{tpu_custom_call.1} parent=1 // loop_header_branch
      %16 = sbr.rel (%p14) target = $region8
    $region5: #{tpu_custom_call.1} parent=1 // loop_body
      %s18 = ssub.s32 %s13, 1
      %s19 = ssub.s32 %s13, 2
      %s20 = sadd.s32 %s13, 1
      %s21 = ssub.s32 %s13, %s20
      %p22 = scmp.eq.s32.totalorder %s21, 0
      %s24 = sadd.s32 %s23, 1
      %s25 = scalar_select %p22, %s23, %s24
      %p28 = pneg %p22
      %p29 = scmp.eq.s32.totalorder %s13, 1
      %p30 = por %p28, %p29
      %p31 = scmp.ne.s32.totalorder %s23, %s26
      %p32 = scmp.eq.s32.totalorder %s13, 0
      %p33 = por %p31, %p32
      %p34 = scmp.ne.s32.totalorder %s23, %s26
      %p35 = scmp.eq.s32.totalorder %s18, 1
      %p36 = por %p34, %p35
      %p37 = scmp.ne.s32.totalorder %s26, %s27
      %p38 = scmp.eq.s32.totalorder %s18, 0
      %p39 = por %p37, %p38
      %p40 = scmp.ne.s32.totalorder %s26, %s27
      %p41 = scmp.eq.s32.totalorder %s19, 1
      %p42 = por %p40, %p41
      %p44 = scmp.ne.s32.totalorder %s27, %s43
      %p45 = scmp.eq.s32.totalorder %s19, 0
      %p46 = por %p44, %p45
      %s47 = ssub.s32 %s13, %s20
      %p48 = scmp.eq.s32.totalorder %s47, 0
      %s50 = sadd.s32 %s49, 1
      %s51 = scalar_select %p48, %s49, %s50
      %p54 = pneg %p48
      %p55 = scmp.eq.s32.totalorder %s13, 1
      %p56 = por %p54, %p55
      %p57 = scmp.ne.s32.totalorder %s49, %s52
      %p58 = scmp.eq.s32.totalorder %s13, 0
      %p59 = por %p57, %p58
      %p60 = scmp.ne.s32.totalorder %s49, %s52
      %p61 = scmp.eq.s32.totalorder %s18, 1
      %p62 = por %p60, %p61
      %p63 = scmp.ne.s32.totalorder %s52, %s53
      %p64 = scmp.eq.s32.totalorder %s18, 0
      %p65 = por %p63, %p64
      %p66 = scmp.ne.s32.totalorder %s52, %s53
      %p67 = scmp.eq.s32.totalorder %s19, 1
      %p68 = por %p66, %p67
      %p70 = scmp.ne.s32.totalorder %s53, %s69
      %p71 = scmp.eq.s32.totalorder %s19, 0
      %p72 = por %p70, %p71
      %s73 = ssub.s32 %s13, %s20
      %p74 = scmp.eq.s32.totalorder %s73, 0
      %s76 = sadd.s32 %s75, 1
      %s77 = scalar_select %p74, %s75, %s76
      %p80 = pneg %p74
      %p81 = scmp.eq.s32.totalorder %s13, 1
      %p82 = por %p80, %p81
      %p83 = scmp.ne.s32.totalorder %s75, %s78
      %p84 = scmp.eq.s32.totalorder %s13, 0
      %p85 = por %p83, %p84
      %p86 = scmp.ne.s32.totalorder %s75, %s78
      %p87 = scmp.eq.s32.totalorder %s18, 1
      %p88 = por %p86, %p87
      %p89 = scmp.ne.s32.totalorder %s78, %s79
      %p90 = scmp.eq.s32.totalorder %s18, 0
      %p91 = por %p89, %p90
      %p92 = scmp.ne.s32.totalorder %s78, %s79
      %p93 = scmp.eq.s32.totalorder %s19, 1
      %p94 = por %p92, %p93
      %p96 = scmp.ne.s32.totalorder %s79, %s95
      %p97 = scmp.eq.s32.totalorder %s19, 0
      %p98 = por %p96, %p97
      %s99 = ssub.s32 %s13, %s20
      %p100 = scmp.eq.s32.totalorder %s99, 0
      %s102 = sadd.s32 %s101, 1
      %s103 = scalar_select %p100, %s101, %s102
      %p106 = pneg %p100
      %p107 = scmp.eq.s32.totalorder %s13, 1
      %p108 = por %p106, %p107
      %p109 = scmp.ne.s32.totalorder %s101, %s104
      %p110 = scmp.eq.s32.totalorder %s13, 0
      %p111 = por %p109, %p110
      %p112 = scmp.ne.s32.totalorder %s101, %s104
      %p113 = scmp.eq.s32.totalorder %s18, 1
      %p114 = por %p112, %p113
      %p115 = scmp.ne.s32.totalorder %s104, %s105
      %p116 = scmp.eq.s32.totalorder %s18, 0
      %p117 = por %p115, %p116
      %p118 = scmp.ne.s32.totalorder %s104, %s105
      %p119 = scmp.eq.s32.totalorder %s19, 1
      %p120 = por %p118, %p119
      %p122 = scmp.ne.s32.totalorder %s105, %s121
      %p123 = scmp.eq.s32.totalorder %s19, 0
      %p124 = por %p122, %p123
      %s125 = ssub.s32 %s13, %s20
      %p126 = scmp.eq.s32.totalorder %s125, 0
      %s128 = sadd.s32 %s127, 1
      %s129 = scalar_select %p126, %s127, %s128
      %p132 = pneg %p126
      %p133 = scmp.eq.s32.totalorder %s13, 1
      %p134 = por %p132, %p133
      %p135 = scmp.ne.s32.totalorder %s127, %s130
      %p136 = scmp.eq.s32.totalorder %s13, 0
      %p137 = por %p135, %p136
      %p138 = scmp.ne.s32.totalorder %s127, %s130
      %p139 = scmp.eq.s32.totalorder %s18, 1
      %p140 = por %p138, %p139
      %p141 = scmp.ne.s32.totalorder %s130, %s131
      %p142 = scmp.eq.s32.totalorder %s18, 0
      %p143 = por %p141, %p142
      %p144 = scmp.ne.s32.totalorder %s130, %s131
      %p145 = scmp.eq.s32.totalorder %s19, 1
      %p146 = por %p144, %p145
      %p148 = scmp.ne.s32.totalorder %s131, %s147
      %p149 = scmp.eq.s32.totalorder %s19, 0
      %p150 = por %p148, %p149
      %p151 = scmp.le.s32.totalorder 1, %s13
      %p152 = scmp.lt.s32.totalorder %s13, 3
      %p153 = pnand %p151, %p152
      %p154 = pneg %p153
      // Predicated region
      $region9: #{tpu_custom_call.1} parent=5 // pred_check
        _
      $region10: #{tpu_custom_call.1} parent=5 // pred_check_branch
        %156 = sbr.rel (%p153) target = $region12
      $region11: #{tpu_custom_call.1} parent=5 // pred_region
        %s157 = ssub.s32 %s13, 1
      $region12: #{tpu_custom_call.1} parent=5 // pred_fallthru
        _
      %p158 = scmp.lt.s32.totalorder %s13, 2
      // Predicated region
      $region13: #{tpu_custom_call.1} parent=5 // pred_check
        %p159 = pneg %p158
      $region14: #{tpu_custom_call.1} parent=5 // pred_check_branch
        %161 = sbr.rel (%p159) target = $region16
      $region15: #{tpu_custom_call.1} parent=5 // pred_region
        // Predicated region
        $region17: #{tpu_custom_call.1} parent=15 // pred_check
          %p162 = pneg %p33
        $region18: #{tpu_custom_call.1} parent=15 // pred_check_branch
          %164 = sbr.rel (%p162) target = $region20
        $region19: #{tpu_custom_call.1} parent=15 // pred_region
          %p165 = scmp.lt.s32.totalorder %s13, 1
          %s166 = scalar_select %p165, %s13, 1
          %s167 = smul.addr %s166, 8
          %s168 = scalar_lea.vmem %s0, %s167
        $region20: #{tpu_custom_call.1} parent=15 // pred_fallthru
          _
        // Predicated region
        $region21: #{tpu_custom_call.1} parent=15 // pred_check
          %p169 = pneg %p59
        $region22: #{tpu_custom_call.1} parent=15 // pred_check_branch
          %171 = sbr.rel (%p169) target = $region24
        $region23: #{tpu_custom_call.1} parent=15 // pred_region
          %s172 = sand.u32 %s49, 1
          %s173 = sand.u32 %s49, 1
          %s174 = smul.addr %s173, 384
          %s175 = scalar_lea.vmem [#allocation2], %s174
          %s176 = smul.addr %s13, 8
          %s177 = scalar_lea.vmem %s1, %s176
          // Predicated region
          $region25: #{tpu_custom_call.1} parent=23 // pred_check
            _
          $region26: #{tpu_custom_call.1} parent=23 // pred_check_branch
            %179 = sbr.rel (0) target = $region28
          $region27: #{tpu_custom_call.1} parent=23 // pred_region
            // Predicated region
            $region29: #{tpu_custom_call.1} parent=27 // pred_check
              _
            $region30: #{tpu_custom_call.1} parent=27 // pred_check_branch
              %181 = sbr.rel (0) target = $region32
            $region31: #{tpu_custom_call.1} parent=27 // pred_region
              // Predicated region
              $region44: #{tpu_custom_call.1} parent=31 // pred_check
                _
              $region45: #{tpu_custom_call.1} parent=31 // pred_check_branch
                %291 = sbr.rel (0) target = $region47
              $region46: #{tpu_custom_call.1} parent=31 // pred_region
                loop: start=0, step=1, limit=1
                $region48: #{tpu_custom_call.1} parent=46 // loop_pre_header
                  _
                $region49: #{tpu_custom_call.1} parent=46 // loop_header
                  %s293 = sphi 0, %s297
                  %p294 = scmp.ge.s32.totalorder %s293, 1
                  %s298 = sphi %s177, %s177
                  %s299 = sphi %s175, %s175
                $region50: #{tpu_custom_call.1} parent=46 // loop_header_branch
                  %296 = sbr.rel (%p294) target = $region54
                $region51: #{tpu_custom_call.1} parent=46 // loop_body
                  %v300 = vld [vmem:[%s298] sm:$0xff]
                  %301 = vst [vmem:[%s299] sm:$0xff] %v300
                  %v302 = vld [vmem:[%s298 + $0x10] sm:$0xff]
                  %303 = vst [vmem:[%s299 + $0x8] sm:$0xff] %v302
                  %v304 = vld [vmem:[%s298 + $0x20] sm:$0xff]
                  %305 = vst [vmem:[%s299 + $0x10] sm:$0xff] %v304
                  %v306 = vld [vmem:[%s298 + $0x30] sm:$0xff]
                  %307 = vst [vmem:[%s299 + $0x18] sm:$0xff] %v306
                  %v308 = vld [vmem:[%s298 + $0x40] sm:$0xff]
                  %309 = vst [vmem:[%s299 + $0x20] sm:$0xff] %v308
                  %v310 = vld [vmem:[%s298 + $0x50] sm:$0xff]
                  %311 = vst [vmem:[%s299 + $0x28] sm:$0xff] %v310
                  %v312 = vld [vmem:[%s298 + $0x60] sm:$0xff]
                  %313 = vst [vmem:[%s299 + $0x30] sm:$0xff] %v312
                  %v314 = vld [vmem:[%s298 + $0x70] sm:$0xff]
                  %315 = vst [vmem:[%s299 + $0x38] sm:$0xff] %v314
                  %v316 = vld [vmem:[%s298 + $0x80] sm:$0xff]
                  %317 = vst [vmem:[%s299 + $0x40] sm:$0xff] %v316
                  %v318 = vld [vmem:[%s298 + $0x90] sm:$0xff]
                  %319 = vst [vmem:[%s299 + $0x48] sm:$0xff] %v318
                  %v320 = vld [vmem:[%s298 + $0xa0] sm:$0xff]
                  %321 = vst [vmem:[%s299 + $0x50] sm:$0xff] %v320
                  %v322 = vld [vmem:[%s298 + $0xb0] sm:$0xff]
                  %323 = vst [vmem:[%s299 + $0x58] sm:$0xff] %v322
                  %v324 = vld [vmem:[%s298 + $0xc0] sm:$0xff]
                  %325 = vst [vmem:[%s299 + $0x60] sm:$0xff] %v324
                  %v326 = vld [vmem:[%s298 + $0xd0] sm:$0xff]
                  %327 = vst [vmem:[%s299 + $0x68] sm:$0xff] %v326
                  %v328 = vld [vmem:[%s298 + $0xe0] sm:$0xff]
                  %329 = vst [vmem:[%s299 + $0x70] sm:$0xff] %v328
                  %v330 = vld [vmem:[%s298 + $0xf0] sm:$0xff]
                  %331 = vst [vmem:[%s299 + $0x78] sm:$0xff] %v330
                  %v332 = vld [vmem:[%s298 + $0x100] sm:$0xff]
                  %333 = vst [vmem:[%s299 + $0x80] sm:$0xff] %v332
                  %v334 = vld [vmem:[%s298 + $0x110] sm:$0xff]
                  %335 = vst [vmem:[%s299 + $0x88] sm:$0xff] %v334
                  %v336 = vld [vmem:[%s298 + $0x120] sm:$0xff]
                  %337 = vst [vmem:[%s299 + $0x90] sm:$0xff] %v336
                  %v338 = vld [vmem:[%s298 + $0x130] sm:$0xff]
                  %339 = vst [vmem:[%s299 + $0x98] sm:$0xff] %v338
                  %v340 = vld [vmem:[%s298 + $0x140] sm:$0xff]
                  %341 = vst [vmem:[%s299 + $0xa0] sm:$0xff] %v340
                  %v342 = vld [vmem:[%s298 + $0x150] sm:$0xff]
                  %343 = vst [vmem:[%s299 + $0xa8] sm:$0xff] %v342
                  %v344 = vld [vmem:[%s298 + $0x160] sm:$0xff]
                  %345 = vst [vmem:[%s299 + $0xb0] sm:$0xff] %v344
                  %v346 = vld [vmem:[%s298 + $0x170] sm:$0xff]
                  %347 = vst [vmem:[%s299 + $0xb8] sm:$0xff] %v346
                  %v348 = vld [vmem:[%s298 + $0x180] sm:$0xff]
                  %349 = vst [vmem:[%s299 + $0xc0] sm:$0xff] %v348
                  %v350 = vld [vmem:[%s298 + $0x190] sm:$0xff]
                  %351 = vst [vmem:[%s299 + $0xc8] sm:$0xff] %v350
                  %v352 = vld [vmem:[%s298 + $0x1a0] sm:$0xff]
                  %353 = vst [vmem:[%s299 + $0xd0] sm:$0xff] %v352
                  %v354 = vld [vmem:[%s298 + $0x1b0] sm:$0xff]
                  %355 = vst [vmem:[%s299 + $0xd8] sm:$0xff] %v354
                  %v356 = vld [vmem:[%s298 + $0x1c0] sm:$0xff]
                  %357 = vst [vmem:[%s299 + $0xe0] sm:$0xff] %v356
                  %v358 = vld [vmem:[%s298 + $0x1d0] sm:$0xff]
                  %359 = vst [vmem:[%s299 + $0xe8] sm:$0xff] %v358
                  %v360 = vld [vmem:[%s298 + $0x1e0] sm:$0xff]
                  %361 = vst [vmem:[%s299 + $0xf0] sm:$0xff] %v360
                  %v362 = vld [vmem:[%s298 + $0x1f0] sm:$0xff]
                  %363 = vst [vmem:[%s299 + $0xf8] sm:$0xff] %v362
                  %v364 = vld [vmem:[%s298 + $0x200] sm:$0xff]
                  %365 = vst [vmem:[%s299 + $0x100] sm:$0xff] %v364
                  %v366 = vld [vmem:[%s298 + $0x210] sm:$0xff]
                  %367 = vst [vmem:[%s299 + $0x108] sm:$0xff] %v366
                  %v368 = vld [vmem:[%s298 + $0x220] sm:$0xff]
                  %369 = vst [vmem:[%s299 + $0x110] sm:$0xff] %v368
                  %v370 = vld [vmem:[%s298 + $0x230] sm:$0xff]
                  %371 = vst [vmem:[%s299 + $0x118] sm:$0xff] %v370
                  %v372 = vld [vmem:[%s298 + $0x240] sm:$0xff]
                  %373 = vst [vmem:[%s299 + $0x120] sm:$0xff] %v372
                  %v374 = vld [vmem:[%s298 + $0x250] sm:$0xff]
                  %375 = vst [vmem:[%s299 + $0x128] sm:$0xff] %v374
                  %v376 = vld [vmem:[%s298 + $0x260] sm:$0xff]
                  %377 = vst [vmem:[%s299 + $0x130] sm:$0xff] %v376
                  %v378 = vld [vmem:[%s298 + $0x270] sm:$0xff]
                  %379 = vst [vmem:[%s299 + $0x138] sm:$0xff] %v378
                  %v380 = vld [vmem:[%s298 + $0x280] sm:$0xff]
                  %381 = vst [vmem:[%s299 + $0x140] sm:$0xff] %v380
                  %v382 = vld [vmem:[%s298 + $0x290] sm:$0xff]
                  %383 = vst [vmem:[%s299 + $0x148] sm:$0xff] %v382
                  %v384 = vld [vmem:[%s298 + $0x2a0] sm:$0xff]
                  %385 = vst [vmem:[%s299 + $0x150] sm:$0xff] %v384
                  %v386 = vld [vmem:[%s298 + $0x2b0] sm:$0xff]
                  %387 = vst [vmem:[%s299 + $0x158] sm:$0xff] %v386
                  %v388 = vld [vmem:[%s298 + $0x2c0] sm:$0xff]
                  %389 = vst [vmem:[%s299 + $0x160] sm:$0xff] %v388
                  %v390 = vld [vmem:[%s298 + $0x2d0] sm:$0xff]
                  %391 = vst [vmem:[%s299 + $0x168] sm:$0xff] %v390
                  %v392 = vld [vmem:[%s298 + $0x2e0] sm:$0xff]
                  %393 = vst [vmem:[%s299 + $0x170] sm:$0xff] %v392
                  %v394 = vld [vmem:[%s298 + $0x2f0] sm:$0xff]
                  %395 = vst [vmem:[%s299 + $0x178] sm:$0xff] %v394
                $region52: #{tpu_custom_call.1} parent=46 // loop_footer
                  %s297 = sadd.s32 1, %s293
                $region53: #{tpu_custom_call.1} parent=46 // loop_footer_branch
                  %292 = sbr.rel target = $region49
                $region54: #{tpu_custom_call.1} parent=46 // loop_exit
                  _
              $region47: #{tpu_custom_call.1} parent=31 // pred_fallthru
                _
              // Predicated region
              $region55: #{tpu_custom_call.1} parent=31 // pred_check
                _
              $region56: #{tpu_custom_call.1} parent=31 // pred_check_branch
                %397 = sbr.rel target = $region58
              $region57: #{tpu_custom_call.1} parent=31 // pred_region
                _
              $region58: #{tpu_custom_call.1} parent=31 // pred_fallthru
                _
            $region32: #{tpu_custom_call.1} parent=27 // pred_fallthru
              _
            // Predicated region
            $region33: #{tpu_custom_call.1} parent=27 // pred_check
              _
            $region34: #{tpu_custom_call.1} parent=27 // pred_check_branch
              %183 = sbr.rel target = $region36
            $region35: #{tpu_custom_call.1} parent=27 // pred_region
              %s185 = ssub.s32 256, 1
              loop: start=0, step=1, limit=1
              $region37: #{tpu_custom_call.1} parent=35 // loop_pre_header
                _
              $region38: #{tpu_custom_call.1} parent=35 // loop_header
                %s187 = sphi 0, %s191
                %p188 = scmp.ge.s32.totalorder %s187, 1
                %s192 = sphi %s177, %s177
                %s193 = sphi %s175, %s175
              $region39: #{tpu_custom_call.1} parent=35 // loop_header_branch
                %190 = sbr.rel (%p188) target = $region43
              $region40: #{tpu_custom_call.1} parent=35 // loop_body
                %v194 = vld [vmem:[%s192] sm:%s185]
                %195 = vst [vmem:[%s193] sm:%s185] %v194
                %v196 = vld [vmem:[%s192 + $0x10] sm:%s185]
                %197 = vst [vmem:[%s193 + $0x8] sm:%s185] %v196
                %v198 = vld [vmem:[%s192 + $0x20] sm:%s185]
                %199 = vst [vmem:[%s193 + $0x10] sm:%s185] %v198
                %v200 = vld [vmem:[%s192 + $0x30] sm:%s185]
                %201 = vst [vmem:[%s193 + $0x18] sm:%s185] %v200
                %v202 = vld [vmem:[%s192 + $0x40] sm:%s185]
                %203 = vst [vmem:[%s193 + $0x20] sm:%s185] %v202
                %v204 = vld [vmem:[%s192 + $0x50] sm:%s185]
                %205 = vst [vmem:[%s193 + $0x28] sm:%s185] %v204
                %v206 = vld [vmem:[%s192 + $0x60] sm:%s185]
                %207 = vst [vmem:[%s193 + $0x30] sm:%s185] %v206
                %v208 = vld [vmem:[%s192 + $0x70] sm:%s185]
                %209 = vst [vmem:[%s193 + $0x38] sm:%s185] %v208
                %v210 = vld [vmem:[%s192 + $0x80] sm:%s185]
                %211 = vst [vmem:[%s193 + $0x40] sm:%s185] %v210
                %v212 = vld [vmem:[%s192 + $0x90] sm:%s185]
                %213 = vst [vmem:[%s193 + $0x48] sm:%s185] %v212
                %v214 = vld [vmem:[%s192 + $0xa0] sm:%s185]
                %215 = vst [vmem:[%s193 + $0x50] sm:%s185] %v214
                %v216 = vld [vmem:[%s192 + $0xb0] sm:%s185]
                %217 = vst [vmem:[%s193 + $0x58] sm:%s185] %v216
                %v218 = vld [vmem:[%s192 + $0xc0] sm:%s185]
                %219 = vst [vmem:[%s193 + $0x60] sm:%s185] %v218
                %v220 = vld [vmem:[%s192 + $0xd0] sm:%s185]
                %221 = vst [vmem:[%s193 + $0x68] sm:%s185] %v220
                %v222 = vld [vmem:[%s192 + $0xe0] sm:%s185]
                %223 = vst [vmem:[%s193 + $0x70] sm:%s185] %v222
                %v224 = vld [vmem:[%s192 + $0xf0] sm:%s185]
                %225 = vst [vmem:[%s193 + $0x78] sm:%s185] %v224
                %v226 = vld [vmem:[%s192 + $0x100] sm:%s185]
                %227 = vst [vmem:[%s193 + $0x80] sm:%s185] %v226
                %v228 = vld [vmem:[%s192 + $0x110] sm:%s185]
                %229 = vst [vmem:[%s193 + $0x88] sm:%s185] %v228
                %v230 = vld [vmem:[%s192 + $0x120] sm:%s185]
                %231 = vst [vmem:[%s193 + $0x90] sm:%s185] %v230
                %v232 = vld [vmem:[%s192 + $0x130] sm:%s185]
                %233 = vst [vmem:[%s193 + $0x98] sm:%s185] %v232
                %v234 = vld [vmem:[%s192 + $0x140] sm:%s185]
                %235 = vst [vmem:[%s193 + $0xa0] sm:%s185] %v234
                %v236 = vld [vmem:[%s192 + $0x150] sm:%s185]
                %237 = vst [vmem:[%s193 + $0xa8] sm:%s185] %v236
                %v238 = vld [vmem:[%s192 + $0x160] sm:%s185]
                %239 = vst [vmem:[%s193 + $0xb0] sm:%s185] %v238
                %v240 = vld [vmem:[%s192 + $0x170] sm:%s185]
                %241 = vst [vmem:[%s193 + $0xb8] sm:%s185] %v240
                %v242 = vld [vmem:[%s192 + $0x180] sm:%s185]
                %243 = vst [vmem:[%s193 + $0xc0] sm:%s185] %v242
                %v244 = vld [vmem:[%s192 + $0x190] sm:%s185]
                %245 = vst [vmem:[%s193 + $0xc8] sm:%s185] %v244
                %v246 = vld [vmem:[%s192 + $0x1a0] sm:%s185]
                %247 = vst [vmem:[%s193 + $0xd0] sm:%s185] %v246
                %v248 = vld [vmem:[%s192 + $0x1b0] sm:%s185]
                %249 = vst [vmem:[%s193 + $0xd8] sm:%s185] %v248
                %v250 = vld [vmem:[%s192 + $0x1c0] sm:%s185]
                %251 = vst [vmem:[%s193 + $0xe0] sm:%s185] %v250
                %v252 = vld [vmem:[%s192 + $0x1d0] sm:%s185]
                %253 = vst [vmem:[%s193 + $0xe8] sm:%s185] %v252
                %v254 = vld [vmem:[%s192 + $0x1e0] sm:%s185]
                %255 = vst [vmem:[%s193 + $0xf0] sm:%s185] %v254
                %v256 = vld [vmem:[%s192 + $0x1f0] sm:%s185]
                %257 = vst [vmem:[%s193 + $0xf8] sm:%s185] %v256
                %v258 = vld [vmem:[%s192 + $0x200] sm:%s185]
                %259 = vst [vmem:[%s193 + $0x100] sm:%s185] %v258
                %v260 = vld [vmem:[%s192 + $0x210] sm:%s185]
                %261 = vst [vmem:[%s193 + $0x108] sm:%s185] %v260
                %v262 = vld [vmem:[%s192 + $0x220] sm:%s185]
                %263 = vst [vmem:[%s193 + $0x110] sm:%s185] %v262
                %v264 = vld [vmem:[%s192 + $0x230] sm:%s185]
                %265 = vst [vmem:[%s193 + $0x118] sm:%s185] %v264
                %v266 = vld [vmem:[%s192 + $0x240] sm:%s185]
                %267 = vst [vmem:[%s193 + $0x120] sm:%s185] %v266
                %v268 = vld [vmem:[%s192 + $0x250] sm:%s185]
                %269 = vst [vmem:[%s193 + $0x128] sm:%s185] %v268
                %v270 = vld [vmem:[%s192 + $0x260] sm:%s185]
                %271 = vst [vmem:[%s193 + $0x130] sm:%s185] %v270
                %v272 = vld [vmem:[%s192 + $0x270] sm:%s185]
                %273 = vst [vmem:[%s193 + $0x138] sm:%s185] %v272
                %v274 = vld [vmem:[%s192 + $0x280] sm:%s185]
                %275 = vst [vmem:[%s193 + $0x140] sm:%s185] %v274
                %v276 = vld [vmem:[%s192 + $0x290] sm:%s185]
                %277 = vst [vmem:[%s193 + $0x148] sm:%s185] %v276
                %v278 = vld [vmem:[%s192 + $0x2a0] sm:%s185]
                %279 = vst [vmem:[%s193 + $0x150] sm:%s185] %v278
                %v280 = vld [vmem:[%s192 + $0x2b0] sm:%s185]
                %281 = vst [vmem:[%s193 + $0x158] sm:%s185] %v280
                %v282 = vld [vmem:[%s192 + $0x2c0] sm:%s185]
                %283 = vst [vmem:[%s193 + $0x160] sm:%s185] %v282
                %v284 = vld [vmem:[%s192 + $0x2d0] sm:%s185]
                %285 = vst [vmem:[%s193 + $0x168] sm:%s185] %v284
                %v286 = vld [vmem:[%s192 + $0x2e0] sm:%s185]
                %287 = vst [vmem:[%s193 + $0x170] sm:%s185] %v286
                %v288 = vld [vmem:[%s192 + $0x2f0] sm:%s185]
                %289 = vst [vmem:[%s193 + $0x178] sm:%s185] %v288
              $region41: #{tpu_custom_call.1} parent=35 // loop_footer
                %s191 = sadd.s32 1, %s187
              $region42: #{tpu_custom_call.1} parent=35 // loop_footer_branch
                %186 = sbr.rel target = $region38
              $region43: #{tpu_custom_call.1} parent=35 // loop_exit
                _
            $region36: #{tpu_custom_call.1} parent=27 // pred_fallthru
              _
          $region28: #{tpu_custom_call.1} parent=23 // pred_fallthru
            _
          %398 = vnop
        $region24: #{tpu_custom_call.1} parent=15 // pred_fallthru
          _
        // Predicated region
        $region59: #{tpu_custom_call.1} parent=15 // pred_check
          %p399 = pneg %p85
        $region60: #{tpu_custom_call.1} parent=15 // pred_check_branch
          %401 = sbr.rel (%p399) target = $region62
        $region61: #{tpu_custom_call.1} parent=15 // pred_region
          %s402 = sand.u32 %s75, 1
          %s403 = sand.u32 %s75, 1
          %s404 = smul.addr %s403, 64
          %s405 = scalar_lea.vmem [#allocation3], %s404
          %s406 = smul.addr %s13, 8
          %s407 = scalar_lea.vmem %s2, %s406
          // Predicated region
          $region63: #{tpu_custom_call.1} parent=61 // pred_check
            _
          $region64: #{tpu_custom_call.1} parent=61 // pred_check_branch
            %409 = sbr.rel (0) target = $region66
          $region65: #{tpu_custom_call.1} parent=61 // pred_region
            // Predicated region
            $region67: #{tpu_custom_call.1} parent=65 // pred_check
              _
            $region68: #{tpu_custom_call.1} parent=65 // pred_check_branch
              %411 = sbr.rel (0) target = $region70
            $region69: #{tpu_custom_call.1} parent=65 // pred_region
              // Predicated region
              $region82: #{tpu_custom_call.1} parent=69 // pred_check
                _
              $region83: #{tpu_custom_call.1} parent=69 // pred_check_branch
                %441 = sbr.rel (0) target = $region85
              $region84: #{tpu_custom_call.1} parent=69 // pred_region
                loop: start=0, step=1, limit=1
                $region86: #{tpu_custom_call.1} parent=84 // loop_pre_header
                  _
                $region87: #{tpu_custom_call.1} parent=84 // loop_header
                  %s443 = sphi 0, %s447
                  %p444 = scmp.ge.s32.totalorder %s443, 1
                  %s448 = sphi %s407, %s407
                  %s449 = sphi %s405, %s405
                $region88: #{tpu_custom_call.1} parent=84 // loop_header_branch
                  %446 = sbr.rel (%p444) target = $region92
                $region89: #{tpu_custom_call.1} parent=84 // loop_body
                  %v450 = vld [vmem:[%s448] sm:$0xff]
                  %451 = vst [vmem:[%s449] sm:$0xff] %v450
                  %v452 = vld [vmem:[%s448 + $0x10] sm:$0xff]
                  %453 = vst [vmem:[%s449 + $0x8] sm:$0xff] %v452
                  %v454 = vld [vmem:[%s448 + $0x20] sm:$0xff]
                  %455 = vst [vmem:[%s449 + $0x10] sm:$0xff] %v454
                  %v456 = vld [vmem:[%s448 + $0x30] sm:$0xff]
                  %457 = vst [vmem:[%s449 + $0x18] sm:$0xff] %v456
                  %v458 = vld [vmem:[%s448 + $0x40] sm:$0xff]
                  %459 = vst [vmem:[%s449 + $0x20] sm:$0xff] %v458
                  %v460 = vld [vmem:[%s448 + $0x50] sm:$0xff]
                  %461 = vst [vmem:[%s449 + $0x28] sm:$0xff] %v460
                  %v462 = vld [vmem:[%s448 + $0x60] sm:$0xff]
                  %463 = vst [vmem:[%s449 + $0x30] sm:$0xff] %v462
                  %v464 = vld [vmem:[%s448 + $0x70] sm:$0xff]
                  %465 = vst [vmem:[%s449 + $0x38] sm:$0xff] %v464
                $region90: #{tpu_custom_call.1} parent=84 // loop_footer
                  %s447 = sadd.s32 1, %s443
                $region91: #{tpu_custom_call.1} parent=84 // loop_footer_branch
                  %442 = sbr.rel target = $region87
                $region92: #{tpu_custom_call.1} parent=84 // loop_exit
                  _
              $region85: #{tpu_custom_call.1} parent=69 // pred_fallthru
                _
              // Predicated region
              $region93: #{tpu_custom_call.1} parent=69 // pred_check
                _
              $region94: #{tpu_custom_call.1} parent=69 // pred_check_branch
                %467 = sbr.rel target = $region96
              $region95: #{tpu_custom_call.1} parent=69 // pred_region
                _
              $region96: #{tpu_custom_call.1} parent=69 // pred_fallthru
                _
            $region70: #{tpu_custom_call.1} parent=65 // pred_fallthru
              _
            // Predicated region
            $region71: #{tpu_custom_call.1} parent=65 // pred_check
              _
            $region72: #{tpu_custom_call.1} parent=65 // pred_check_branch
              %413 = sbr.rel target = $region74
            $region73: #{tpu_custom_call.1} parent=65 // pred_region
              %s415 = ssub.s32 256, 1
              loop: start=0, step=1, limit=1
              $region75: #{tpu_custom_call.1} parent=73 // loop_pre_header
                _
              $region76: #{tpu_custom_call.1} parent=73 // loop_header
                %s417 = sphi 0, %s421
                %p418 = scmp.ge.s32.totalorder %s417, 1
                %s422 = sphi %s407, %s407
                %s423 = sphi %s405, %s405
              $region77: #{tpu_custom_call.1} parent=73 // loop_header_branch
                %420 = sbr.rel (%p418) target = $region81
              $region78: #{tpu_custom_call.1} parent=73 // loop_body
                %v424 = vld [vmem:[%s422] sm:%s415]
                %425 = vst [vmem:[%s423] sm:%s415] %v424
                %v426 = vld [vmem:[%s422 + $0x10] sm:%s415]
                %427 = vst [vmem:[%s423 + $0x8] sm:%s415] %v426
                %v428 = vld [vmem:[%s422 + $0x20] sm:%s415]
                %429 = vst [vmem:[%s423 + $0x10] sm:%s415] %v428
                %v430 = vld [vmem:[%s422 + $0x30] sm:%s415]
                %431 = vst [vmem:[%s423 + $0x18] sm:%s415] %v430
                %v432 = vld [vmem:[%s422 + $0x40] sm:%s415]
                %433 = vst [vmem:[%s423 + $0x20] sm:%s415] %v432
                %v434 = vld [vmem:[%s422 + $0x50] sm:%s415]
                %435 = vst [vmem:[%s423 + $0x28] sm:%s415] %v434
                %v436 = vld [vmem:[%s422 + $0x60] sm:%s415]
                %437 = vst [vmem:[%s423 + $0x30] sm:%s415] %v436
                %v438 = vld [vmem:[%s422 + $0x70] sm:%s415]
                %439 = vst [vmem:[%s423 + $0x38] sm:%s415] %v438
              $region79: #{tpu_custom_call.1} parent=73 // loop_footer
                %s421 = sadd.s32 1, %s417
              $region80: #{tpu_custom_call.1} parent=73 // loop_footer_branch
                %416 = sbr.rel target = $region76
              $region81: #{tpu_custom_call.1} parent=73 // loop_exit
                _
            $region74: #{tpu_custom_call.1} parent=65 // pred_fallthru
              _
          $region66: #{tpu_custom_call.1} parent=61 // pred_fallthru
            _
          %468 = vnop
        $region62: #{tpu_custom_call.1} parent=15 // pred_fallthru
          _
        // Predicated region
        $region97: #{tpu_custom_call.1} parent=15 // pred_check
          %p469 = pneg %p111
        $region98: #{tpu_custom_call.1} parent=15 // pred_check_branch
          %471 = sbr.rel (%p469) target = $region100
        $region99: #{tpu_custom_call.1} parent=15 // pred_region
          %s472 = sand.u32 %s101, 1
          %s473 = sand.u32 %s101, 1
          %s474 = smul.addr %s473, 32
          %s475 = scalar_lea.vmem [#allocation4], %s474
          %s476 = smul.addr %s13, 8
          %s477 = scalar_lea.vmem %s3, %s476
          // Predicated region
          $region101: #{tpu_custom_call.1} parent=99 // pred_check
            _
          $region102: #{tpu_custom_call.1} parent=99 // pred_check_branch
            %479 = sbr.rel (0) target = $region104
          $region103: #{tpu_custom_call.1} parent=99 // pred_region
            // Predicated region
            $region105: #{tpu_custom_call.1} parent=103 // pred_check
              _
            $region106: #{tpu_custom_call.1} parent=103 // pred_check_branch
              %481 = sbr.rel (0) target = $region108
            $region107: #{tpu_custom_call.1} parent=103 // pred_region
              // Predicated region
              $region120: #{tpu_custom_call.1} parent=107 // pred_check
                _
              $region121: #{tpu_custom_call.1} parent=107 // pred_check_branch
                %503 = sbr.rel (0) target = $region123
              $region122: #{tpu_custom_call.1} parent=107 // pred_region
                loop: start=0, step=1, limit=1
                $region124: #{tpu_custom_call.1} parent=122 // loop_pre_header
                  _
                $region125: #{tpu_custom_call.1} parent=122 // loop_header
                  %s505 = sphi 0, %s509
                  %p506 = scmp.ge.s32.totalorder %s505, 1
                  %s510 = sphi %s477, %s477
                  %s511 = sphi %s475, %s475
                $region126: #{tpu_custom_call.1} parent=122 // loop_header_branch
                  %508 = sbr.rel (%p506) target = $region130
                $region127: #{tpu_custom_call.1} parent=122 // loop_body
                  %v512 = vld [vmem:[%s510] sm:$0xff]
                  %513 = vst [vmem:[%s511] sm:$0xff] %v512
                  %v514 = vld [vmem:[%s510 + $0x10] sm:$0xff]
                  %515 = vst [vmem:[%s511 + $0x8] sm:$0xff] %v514
                  %v516 = vld [vmem:[%s510 + $0x20] sm:$0xff]
                  %517 = vst [vmem:[%s511 + $0x10] sm:$0xff] %v516
                  %v518 = vld [vmem:[%s510 + $0x30] sm:$0xff]
                  %519 = vst [vmem:[%s511 + $0x18] sm:$0xff] %v518
                $region128: #{tpu_custom_call.1} parent=122 // loop_footer
                  %s509 = sadd.s32 1, %s505
                $region129: #{tpu_custom_call.1} parent=122 // loop_footer_branch
                  %504 = sbr.rel target = $region125
                $region130: #{tpu_custom_call.1} parent=122 // loop_exit
                  _
              $region123: #{tpu_custom_call.1} parent=107 // pred_fallthru
                _
              // Predicated region
              $region131: #{tpu_custom_call.1} parent=107 // pred_check
                _
              $region132: #{tpu_custom_call.1} parent=107 // pred_check_branch
                %521 = sbr.rel target = $region134
              $region133: #{tpu_custom_call.1} parent=107 // pred_region
                _
              $region134: #{tpu_custom_call.1} parent=107 // pred_fallthru
                _
            $region108: #{tpu_custom_call.1} parent=103 // pred_fallthru
              _
            // Predicated region
            $region109: #{tpu_custom_call.1} parent=103 // pred_check
              _
            $region110: #{tpu_custom_call.1} parent=103 // pred_check_branch
              %483 = sbr.rel target = $region112
            $region111: #{tpu_custom_call.1} parent=103 // pred_region
              %s485 = ssub.s32 256, 1
              loop: start=0, step=1, limit=1
              $region113: #{tpu_custom_call.1} parent=111 // loop_pre_header
                _
              $region114: #{tpu_custom_call.1} parent=111 // loop_header
                %s487 = sphi 0, %s491
                %p488 = scmp.ge.s32.totalorder %s487, 1
                %s492 = sphi %s477, %s477
                %s493 = sphi %s475, %s475
              $region115: #{tpu_custom_call.1} parent=111 // loop_header_branch
                %490 = sbr.rel (%p488) target = $region119
              $region116: #{tpu_custom_call.1} parent=111 // loop_body
                %v494 = vld [vmem:[%s492] sm:%s485]
                %495 = vst [vmem:[%s493] sm:%s485] %v494
                %v496 = vld [vmem:[%s492 + $0x10] sm:%s485]
                %497 = vst [vmem:[%s493 + $0x8] sm:%s485] %v496
                %v498 = vld [vmem:[%s492 + $0x20] sm:%s485]
                %499 = vst [vmem:[%s493 + $0x10] sm:%s485] %v498
                %v500 = vld [vmem:[%s492 + $0x30] sm:%s485]
                %501 = vst [vmem:[%s493 + $0x18] sm:%s485] %v500
              $region117: #{tpu_custom_call.1} parent=111 // loop_footer
                %s491 = sadd.s32 1, %s487
              $region118: #{tpu_custom_call.1} parent=111 // loop_footer_branch
                %486 = sbr.rel target = $region114
              $region119: #{tpu_custom_call.1} parent=111 // loop_exit
                _
            $region112: #{tpu_custom_call.1} parent=103 // pred_fallthru
              _
          $region104: #{tpu_custom_call.1} parent=99 // pred_fallthru
            _
          %522 = vnop
        $region100: #{tpu_custom_call.1} parent=15 // pred_fallthru
          _
      $region16: #{tpu_custom_call.1} parent=5 // pred_fallthru
        _
      %p523 = scmp.le.s32.totalorder 1, %s13
      %p524 = scmp.lt.s32.totalorder %s13, 3
      %p525 = pnand %p523, %p524
      %p526 = pneg %p525
      // Predicated region
      $region135: #{tpu_custom_call.1} parent=5 // pred_check
        _
      $region136: #{tpu_custom_call.1} parent=5 // pred_check_branch
        %528 = sbr.rel (%p525) target = $region138
      $region137: #{tpu_custom_call.1} parent=5 // pred_region
        %s529 = ssub.s32 %s13, 1
        %s530 = sand.u32 %s52, 1
        %s531 = sand.u32 %s52, 1
        %s532 = smul.addr %s531, 384
        %s533 = scalar_lea.vmem [#allocation2], %s532
        // Predicated region
        $region139: #{tpu_custom_call.1} parent=137 // pred_check
          %p534 = pneg %p65
        $region140: #{tpu_custom_call.1} parent=137 // pred_check_branch
          %536 = sbr.rel (%p534) target = $region142
        $region141: #{tpu_custom_call.1} parent=137 // pred_region
          _
        $region142: #{tpu_custom_call.1} parent=137 // pred_fallthru
          _
        %s537 = sand.u32 %s78, 1
        %s538 = sand.u32 %s78, 1
        %s539 = smul.addr %s538, 64
        %s540 = scalar_lea.vmem [#allocation3], %s539
        // Predicated region
        $region143: #{tpu_custom_call.1} parent=137 // pred_check
          %p541 = pneg %p91
        $region144: #{tpu_custom_call.1} parent=137 // pred_check_branch
          %543 = sbr.rel (%p541) target = $region146
        $region145: #{tpu_custom_call.1} parent=137 // pred_region
          _
        $region146: #{tpu_custom_call.1} parent=137 // pred_fallthru
          _
        %s544 = sand.u32 %s104, 1
        %s545 = sand.u32 %s104, 1
        %s546 = smul.addr %s545, 32
        %s547 = scalar_lea.vmem [#allocation4], %s546
        // Predicated region
        $region147: #{tpu_custom_call.1} parent=137 // pred_check
          %p548 = pneg %p117
        $region148: #{tpu_custom_call.1} parent=137 // pred_check_branch
          %550 = sbr.rel (%p548) target = $region150
        $region149: #{tpu_custom_call.1} parent=137 // pred_region
          _
        $region150: #{tpu_custom_call.1} parent=137 // pred_fallthru
          _
        %p551 = scmp.lt.s32.totalorder %s18, 1
        %s552 = scalar_select %p551, %s18, 1
        %s553 = smul.addr %s552, 8
        %s554 = scalar_lea.vmem %s0, %s553
        %p555 = pneg %p39
        %p556 = pneg %p36
        %s557 = sand.u32 %s52, 1
        %s558 = sand.u32 %s52, 1
        %s559 = smul.addr %s558, 384
        %s560 = scalar_lea.vmem [#allocation2], %s559
        %p561 = pneg %p65
        %p562 = pneg %p62
        %s563 = sand.u32 %s78, 1
        %s564 = sand.u32 %s78, 1
        %s565 = smul.addr %s564, 64
        %s566 = scalar_lea.vmem [#allocation3], %s565
        %p567 = pneg %p91
        %p568 = pneg %p88
        %s569 = sand.u32 %s104, 1
        %s570 = sand.u32 %s104, 1
        %s571 = smul.addr %s570, 32
        %s572 = scalar_lea.vmem [#allocation4], %s571
        %p573 = pneg %p117
        %p574 = pneg %p114
        %p575 = pneg %p143
        %p576 = pneg %p140
        %s577 = sand.u32 %s130, 1
        %s578 = scalar_lea.sflag [#allocation6], %s577
        %s579 = sand.u32 %s130, 1
        %s580 = smul.addr %s579, 4
        %s581 = scalar_lea.vmem [#allocation5], %s580
        %p582 = scmp.lt.s32.totalorder %s18, 1
        %s583 = scalar_select %p582, %s18, 1
        %s584 = smul.addr %s583, 8
        %s585 = scalar_lea.vmem %s0, %s584
        %v586 = vld [vmem:[%s547] sm:$0xff]
        %v587 = vld [vmem:[%s547 + $0x8] sm:$0xff]
        %v588 = vld [vmem:[%s547 + $0x10] sm:$0xff]
        %v589 = vld [vmem:[%s547 + $0x18] sm:$0x3f]
        %v590 = vld [vmem:[%s540] sm:$0xff]
        %v591 = vld [vmem:[%s540 + $0x8] sm:$0xff]
        %v592 = vld [vmem:[%s540 + $0x10] sm:$0xff]
        %v593 = vld [vmem:[%s540 + $0x18] sm:$0x3f]
        %s594 = scalar_lea.vmem %s540, 32 [#allocation3]
        %v595 = vld [vmem:[%s594] sm:$0xff]
        %v596 = vld [vmem:[%s594 + $0x8] sm:$0xff]
        %v597 = vld [vmem:[%s594 + $0x10] sm:$0xff]
        %v598 = vld [vmem:[%s594 + $0x18] sm:$0x3f]
        %v599 = vld [vmem:[%s533] sm:$0xff]
        %v600 = vld [vmem:[%s533 + $0x8] sm:$0xff]
        %v601 = vld [vmem:[%s533 + $0x10] sm:$0xff]
        %v602 = vld [vmem:[%s533 + $0x18] sm:$0x3f]
        %v603 = vld [vmem:[%s533 + $0x20] sm:$0xff]
        %v604 = vld [vmem:[%s533 + $0x28] sm:$0xff]
        %v605 = vld [vmem:[%s533 + $0x30] sm:$0xff]
        %v606 = vld [vmem:[%s533 + $0x38] sm:$0x3f]
        %v607 = vld [vmem:[%s533 + $0x40] sm:$0xff]
        %v608 = vld [vmem:[%s533 + $0x48] sm:$0xff]
        %v609 = vld [vmem:[%s533 + $0x50] sm:$0xff]
        %v610 = vld [vmem:[%s533 + $0x58] sm:$0x3f]
        %v611 = vld [vmem:[%s533 + $0x60] sm:$0xff]
        %v612 = vld [vmem:[%s533 + $0x68] sm:$0xff]
        %v613 = vld [vmem:[%s533 + $0x70] sm:$0xff]
        %v614 = vld [vmem:[%s533 + $0x78] sm:$0x3f]
        %v615 = vld [vmem:[%s533 + $0x80] sm:$0xff]
        %v616 = vld [vmem:[%s533 + $0x88] sm:$0xff]
        %v617 = vld [vmem:[%s533 + $0x90] sm:$0xff]
        %v618 = vld [vmem:[%s533 + $0x98] sm:$0x3f]
        %v619 = vld [vmem:[%s533 + $0xa0] sm:$0xff]
        %v620 = vld [vmem:[%s533 + $0xa8] sm:$0xff]
        %v621 = vld [vmem:[%s533 + $0xb0] sm:$0xff]
        %v622 = vld [vmem:[%s533 + $0xb8] sm:$0x3f]
        %s623 = scalar_lea.vmem %s533, 192 [#allocation2]
        %v624 = vld [vmem:[%s623] sm:$0xff]
        %v625 = vld [vmem:[%s623 + $0x8] sm:$0xff]
        %v626 = vld [vmem:[%s623 + $0x10] sm:$0xff]
        %v627 = vld [vmem:[%s623 + $0x18] sm:$0x3f]
        %v628 = vld [vmem:[%s623 + $0x20] sm:$0xff]
        %v629 = vld [vmem:[%s623 + $0x28] sm:$0xff]
        %v630 = vld [vmem:[%s623 + $0x30] sm:$0xff]
        %v631 = vld [vmem:[%s623 + $0x38] sm:$0x3f]
        %v632 = vld [vmem:[%s623 + $0x40] sm:$0xff]
        %v633 = vld [vmem:[%s623 + $0x48] sm:$0xff]
        %v634 = vld [vmem:[%s623 + $0x50] sm:$0xff]
        %v635 = vld [vmem:[%s623 + $0x58] sm:$0x3f]
        %v636 = vld [vmem:[%s623 + $0x60] sm:$0xff]
        %v637 = vld [vmem:[%s623 + $0x68] sm:$0xff]
        %v638 = vld [vmem:[%s623 + $0x70] sm:$0xff]
        %v639 = vld [vmem:[%s623 + $0x78] sm:$0x3f]
        %v640 = vld [vmem:[%s623 + $0x80] sm:$0xff]
        %v641 = vld [vmem:[%s623 + $0x88] sm:$0xff]
        %v642 = vld [vmem:[%s623 + $0x90] sm:$0xff]
        %v643 = vld [vmem:[%s623 + $0x98] sm:$0x3f]
        %v644 = vld [vmem:[%s623 + $0xa0] sm:$0xff]
        %v645 = vld [vmem:[%s623 + $0xa8] sm:$0xff]
        %v646 = vld [vmem:[%s623 + $0xb0] sm:$0xff]
        %v647 = vld [vmem:[%s623 + $0xb8] sm:$0x3f]
        %v648 = vld [vmem:[%s585] sm:$0x3f]
        %v649 = vlaneseq
        %v650 = vshrl.u32 %v649, 7
        %v651 = vadd.s32 %v650, 8
        %v652 = vadd.s32 %v650, 16
        %v653 = vadd.s32 %v650, 24
        %v654 = vcvt.s32.f32 %v650
        %v655 = vcvt.s32.f32 %v651
        %v656 = vcvt.s32.f32 %v652
        %v657 = vcvt.s32.f32 %v653
        %v658 = vmul.f32 %v654, 0.1
        %v659 = vmul.f32 %v655, 0.1
        %v660 = vmul.f32 %v656, 0.1
        %v661 = vmul.f32 %v657, 0.1
        %v662 = vrcp.pop 30.0
        %v663 = vmul.f32 %v658, %v662
        %v664 = vmul.f32 %v659, %v662
        %v665 = vmul.f32 %v660, %v662
        %v666 = vmul.f32 %v661, %v662
        %v667 = vadd.f32 %v586, %v663
        %v668 = vadd.f32 %v587, %v664
        %v669 = vadd.f32 %v588, %v665
        %v670 = vadd.f32 %v589, %v666
        %vm671 = vcmask 1045504
        %v672 = vsel %vm671, %v670, -inf
        %v673 = vmax.f32 %v667, %v668
        %v674 = vmax.f32 %v669, %v672
        %v675 = vmax.f32 %v673, %v674
        %v676 = vrot.slane %v675, 4
        %v677 = vmax.f32 %v675, %v676
        %v678 = vrot.slane %v677, 2
        %v679 = vmax.f32 %v677, %v678
        %v680 = vrot.slane %v679, 1
        %v681 = vmax.f32 %v679, %v680
        %vm682 = vcmp.gt.f32.partialorder %v681, 1.0
        %v683 = vsel %vm682, 1, 0
        %v684 = vcvt.s32.f32 %v683
        %vm685 = vcmp.eq.f32.partialorder %v667, %v681
        %vm686 = vcmp.eq.f32.partialorder %v668, %v681
        %vm687 = vcmp.eq.f32.partialorder %v669, %v681
        %vm688 = vcmp.eq.f32.partialorder %v670, %v681
        %v689 = vsel %vm685, 1, 0
        %v690 = vsel %vm686, 1, 0
        %v691 = vsel %vm687, 1, 0
        %v692 = vsel %vm688, 1, 0
        %v693 = vcvt.s32.f32 %v689
        %v694 = vcvt.s32.f32 %v690
        %v695 = vcvt.s32.f32 %v691
        %v696 = vcvt.s32.f32 %v692
        %v697 = vmul.f32 %v693, %v590
        %v698 = vmul.f32 %v694, %v591
        %v699 = vmul.f32 %v695, %v592
        %v700 = vmul.f32 %v696, %v593
        %v701 = vadd.f32 %v697, %v698
        %v702 = vadd.f32 %v701, %v699
        %v703 = vsel %vm671, %v700, 0.0
        %v704 = vadd.f32 %v702, %v703
        %v705 = vrot.slane %v704, 4
        %v706 = vadd.f32 %v704, %v705
        %v707 = vrot.slane %v706, 2
        %v708 = vadd.f32 %v706, %v707
        %v709 = vrot.slane %v708, 1
        %v710 = vadd.f32 %v708, %v709
        %v711 = vmul.f32 %v693, %v595
        %v712 = vmul.f32 %v694, %v596
        %v713 = vmul.f32 %v695, %v597
        %v714 = vmul.f32 %v696, %v598
        %v715 = vadd.f32 %v711, %v712
        %v716 = vadd.f32 %v715, %v713
        %v717 = vsel %vm671, %v714, 0.0
        %v718 = vadd.f32 %v716, %v717
        %v719 = vrot.slane %v718, 4
        %v720 = vadd.f32 %v718, %v719
        %v721 = vrot.slane %v720, 2
        %v722 = vadd.f32 %v720, %v721
        %v723 = vrot.slane %v722, 1
        %v724 = vadd.f32 %v722, %v723
        %v725 = vmul.f32 %v693, %v599
        %v726 = vmul.f32 %v694, %v600
        %v727 = vmul.f32 %v695, %v601
        %v728 = vmul.f32 %v696, %v602
        %v729 = vmul.f32 %v693, %v603
        %v730 = vmul.f32 %v694, %v604
        %v731 = vmul.f32 %v695, %v605
        %v732 = vmul.f32 %v696, %v606
        %v733 = vmul.f32 %v693, %v607
        %v734 = vmul.f32 %v694, %v608
        %v735 = vmul.f32 %v695, %v609
        %v736 = vmul.f32 %v696, %v610
        %v737 = vmul.f32 %v693, %v611
        %v738 = vmul.f32 %v694, %v612
        %v739 = vmul.f32 %v695, %v613
        %v740 = vmul.f32 %v696, %v614
        %v741 = vmul.f32 %v693, %v615
        %v742 = vmul.f32 %v694, %v616
        %v743 = vmul.f32 %v695, %v617
        %v744 = vmul.f32 %v696, %v618
        %v745 = vmul.f32 %v693, %v619
        %v746 = vmul.f32 %v694, %v620
        %v747 = vmul.f32 %v695, %v621
        %v748 = vmul.f32 %v696, %v622
        %v749 = vadd.f32 %v725, %v726
        %v750 = vadd.f32 %v749, %v727
        %v751 = vsel %vm671, %v728, 0.0
        %v752 = vadd.f32 %v750, %v751
        %v753 = vrot.slane %v752, 4
        %v754 = vadd.f32 %v752, %v753
        %v755 = vrot.slane %v754, 2
        %v756 = vadd.f32 %v754, %v755
        %v757 = vrot.slane %v756, 1
        %v758 = vadd.f32 %v756, %v757
        %v759 = vadd.f32 %v729, %v730
        %v760 = vadd.f32 %v759, %v731
        %v761 = vsel %vm671, %v732, 0.0
        %v762 = vadd.f32 %v760, %v761
        %v763 = vrot.slane %v762, 4
        %v764 = vadd.f32 %v762, %v763
        %v765 = vrot.slane %v764, 2
        %v766 = vadd.f32 %v764, %v765
        %v767 = vrot.slane %v766, 1
        %v768 = vadd.f32 %v766, %v767
        %v769 = vadd.f32 %v733, %v734
        %v770 = vadd.f32 %v769, %v735
        %v771 = vsel %vm671, %v736, 0.0
        %v772 = vadd.f32 %v770, %v771
        %v773 = vrot.slane %v772, 4
        %v774 = vadd.f32 %v772, %v773
        %v775 = vrot.slane %v774, 2
        %v776 = vadd.f32 %v774, %v775
        %v777 = vrot.slane %v776, 1
        %v778 = vadd.f32 %v776, %v777
        %v779 = vadd.f32 %v737, %v738
        %v780 = vadd.f32 %v779, %v739
        %v781 = vsel %vm671, %v740, 0.0
        %v782 = vadd.f32 %v780, %v781
        %v783 = vrot.slane %v782, 4
        %v784 = vadd.f32 %v782, %v783
        %v785 = vrot.slane %v784, 2
        %v786 = vadd.f32 %v784, %v785
        %v787 = vrot.slane %v786, 1
        %v788 = vadd.f32 %v786, %v787
        %v789 = vadd.f32 %v741, %v742
        %v790 = vadd.f32 %v789, %v743
        %v791 = vsel %vm671, %v744, 0.0
        %v792 = vadd.f32 %v790, %v791
        %v793 = vrot.slane %v792, 4
        %v794 = vadd.f32 %v792, %v793
        %v795 = vrot.slane %v794, 2
        %v796 = vadd.f32 %v794, %v795
        %v797 = vrot.slane %v796, 1
        %v798 = vadd.f32 %v796, %v797
        %v799 = vadd.f32 %v745, %v746
        %v800 = vadd.f32 %v799, %v747
        %v801 = vsel %vm671, %v748, 0.0
        %v802 = vadd.f32 %v800, %v801
        %v803 = vrot.slane %v802, 4
        %v804 = vadd.f32 %v802, %v803
        %v805 = vrot.slane %v804, 2
        %v806 = vadd.f32 %v804, %v805
        %v807 = vrot.slane %v806, 1
        %v808 = vadd.f32 %v806, %v807
        %v809 = vmul.f32 %v693, %v624
        %v810 = vmul.f32 %v694, %v625
        %v811 = vmul.f32 %v695, %v626
        %v812 = vmul.f32 %v696, %v627
        %v813 = vmul.f32 %v693, %v628
        %v814 = vmul.f32 %v694, %v629
        %v815 = vmul.f32 %v695, %v630
        %v816 = vmul.f32 %v696, %v631
        %v817 = vmul.f32 %v693, %v632
        %v818 = vmul.f32 %v694, %v633
        %v819 = vmul.f32 %v695, %v634
        %v820 = vmul.f32 %v696, %v635
        %v821 = vmul.f32 %v693, %v636
        %v822 = vmul.f32 %v694, %v637
        %v823 = vmul.f32 %v695, %v638
        %v824 = vmul.f32 %v696, %v639
        %v825 = vmul.f32 %v693, %v640
        %v826 = vmul.f32 %v694, %v641
        %v827 = vmul.f32 %v695, %v642
        %v828 = vmul.f32 %v696, %v643
        %v829 = vmul.f32 %v693, %v644
        %v830 = vmul.f32 %v694, %v645
        %v831 = vmul.f32 %v695, %v646
        %v832 = vmul.f32 %v696, %v647
        %v833 = vadd.f32 %v809, %v810
        %v834 = vadd.f32 %v833, %v811
        %v835 = vsel %vm671, %v812, 0.0
        %v836 = vadd.f32 %v834, %v835
        %v837 = vrot.slane %v836, 4
        %v838 = vadd.f32 %v836, %v837
        %v839 = vrot.slane %v838, 2
        %v840 = vadd.f32 %v838, %v839
        %v841 = vrot.slane %v840, 1
        %v842 = vadd.f32 %v840, %v841
        %v843 = vadd.f32 %v813, %v814
        %v844 = vadd.f32 %v843, %v815
        %v845 = vsel %vm671, %v816, 0.0
        %v846 = vadd.f32 %v844, %v845
        %v847 = vrot.slane %v846, 4
        %v848 = vadd.f32 %v846, %v847
        %v849 = vrot.slane %v848, 2
        %v850 = vadd.f32 %v848, %v849
        %v851 = vrot.slane %v850, 1
        %v852 = vadd.f32 %v850, %v851
        %v853 = vadd.f32 %v817, %v818
        %v854 = vadd.f32 %v853, %v819
        %v855 = vsel %vm671, %v820, 0.0
        %v856 = vadd.f32 %v854, %v855
        %v857 = vrot.slane %v856, 4
        %v858 = vadd.f32 %v856, %v857
        %v859 = vrot.slane %v858, 2
        %v860 = vadd.f32 %v858, %v859
        %v861 = vrot.slane %v860, 1
        %v862 = vadd.f32 %v860, %v861
        %v863 = vadd.f32 %v821, %v822
        %v864 = vadd.f32 %v863, %v823
        %v865 = vsel %vm671, %v824, 0.0
        %v866 = vadd.f32 %v864, %v865
        %v867 = vrot.slane %v866, 4
        %v868 = vadd.f32 %v866, %v867
        %v869 = vrot.slane %v868, 2
        %v870 = vadd.f32 %v868, %v869
        %v871 = vrot.slane %v870, 1
        %v872 = vadd.f32 %v870, %v871
        %v873 = vadd.f32 %v825, %v826
        %v874 = vadd.f32 %v873, %v827
        %v875 = vsel %vm671, %v828, 0.0
        %v876 = vadd.f32 %v874, %v875
        %v877 = vrot.slane %v876, 4
        %v878 = vadd.f32 %v876, %v877
        %v879 = vrot.slane %v878, 2
        %v880 = vadd.f32 %v878, %v879
        %v881 = vrot.slane %v880, 1
        %v882 = vadd.f32 %v880, %v881
        %v883 = vadd.f32 %v829, %v830
        %v884 = vadd.f32 %v883, %v831
        %v885 = vsel %vm671, %v832, 0.0
        %v886 = vadd.f32 %v884, %v885
        %v887 = vrot.slane %v886, 4
        %v888 = vadd.f32 %v886, %v887
        %v889 = vrot.slane %v888, 2
        %v890 = vadd.f32 %v888, %v889
        %v891 = vrot.slane %v890, 1
        %v892 = vadd.f32 %v890, %v891
        %v893 = vsub.f32 %v758, %v710
        %v894 = vsub.f32 %v768, %v710
        %v895 = vsub.f32 %v778, %v710
        %v896 = vsub.f32 %v788, %v710
        %v897 = vsub.f32 %v798, %v710
        %v898 = vsub.f32 %v808, %v710
        %v899 = vsub.f32 %v842, %v724
        %v900 = vsub.f32 %v852, %v724
        %v901 = vsub.f32 %v862, %v724
        %v902 = vsub.f32 %v872, %v724
        %v903 = vsub.f32 %v882, %v724
        %v904 = vsub.f32 %v892, %v724
        %v905 = vmul.f32 %v893, %v893
        %v906 = vmul.f32 %v894, %v894
        %v907 = vmul.f32 %v895, %v895
        %v908 = vmul.f32 %v896, %v896
        %v909 = vmul.f32 %v897, %v897
        %v910 = vmul.f32 %v898, %v898
        %v911 = vmul.f32 %v899, %v899
        %v912 = vmul.f32 %v900, %v900
        %v913 = vmul.f32 %v901, %v901
        %v914 = vmul.f32 %v902, %v902
        %v915 = vmul.f32 %v903, %v903
        %v916 = vmul.f32 %v904, %v904
        %v917 = vadd.f32 %v905, %v911
        %v918 = vadd.f32 %v906, %v912
        %v919 = vadd.f32 %v907, %v913
        %v920 = vadd.f32 %v908, %v914
        %v921 = vadd.f32 %v909, %v915
        %v922 = vadd.f32 %v910, %v916
        %v923 = vrsqrt.pop %v917
        %v924 = vmul.f32 %v917, %v923
        %vm925 = vcmp.eq.f32.partialorder %v917, inf
        %v926 = vsel %vm925, %v917, %v924
        %vm927 = vcmp.eq.f32.partialorder %v917, 0.0
        %v928 = vand.u32 %v917, 2147483648
        %v929 = vsel %vm927, %v928, %v926
        %v930 = vrsqrt.pop %v918
        %v931 = vmul.f32 %v918, %v930
        %vm932 = vcmp.eq.f32.partialorder %v918, inf
        %v933 = vsel %vm932, %v918, %v931
        %vm934 = vcmp.eq.f32.partialorder %v918, 0.0
        %v935 = vand.u32 %v918, 2147483648
        %v936 = vsel %vm934, %v935, %v933
        %v937 = vrsqrt.pop %v919
        %v938 = vmul.f32 %v919, %v937
        %vm939 = vcmp.eq.f32.partialorder %v919, inf
        %v940 = vsel %vm939, %v919, %v938
        %vm941 = vcmp.eq.f32.partialorder %v919, 0.0
        %v942 = vand.u32 %v919, 2147483648
        %v943 = vsel %vm941, %v942, %v940
        %v944 = vrsqrt.pop %v920
        %v945 = vmul.f32 %v920, %v944
        %vm946 = vcmp.eq.f32.partialorder %v920, inf
        %v947 = vsel %vm946, %v920, %v945
        %vm948 = vcmp.eq.f32.partialorder %v920, 0.0
        %v949 = vand.u32 %v920, 2147483648
        %v950 = vsel %vm948, %v949, %v947
        %v951 = vrsqrt.pop %v921
        %v952 = vmul.f32 %v921, %v951
        %vm953 = vcmp.eq.f32.partialorder %v921, inf
        %v954 = vsel %vm953, %v921, %v952
        %vm955 = vcmp.eq.f32.partialorder %v921, 0.0
        %v956 = vand.u32 %v921, 2147483648
        %v957 = vsel %vm955, %v956, %v954
        %v958 = vrsqrt.pop %v922
        %v959 = vmul.f32 %v922, %v958
        %vm960 = vcmp.eq.f32.partialorder %v922, inf
        %v961 = vsel %vm960, %v922, %v959
        %vm962 = vcmp.eq.f32.partialorder %v922, 0.0
        %v963 = vand.u32 %v922, 2147483648
        %v964 = vsel %vm962, %v963, %v961
        %vm965 = vcmask 1040384
        %v966 = vsel %vm965, %v929, inf
        %v967 = vsel %vm965, %v936, inf
        %v968 = vsel %vm965, %v943, inf
        %v969 = vsel %vm965, %v950, inf
        %v970 = vsel %vm965, %v957, inf
        %v971 = vmin.f32 %v966, %v970
        %v972 = vsel %vm965, %v964, inf
        %v973 = vmin.f32 %v967, %v972
        %v974 = vmin.f32 %v971, %v973
        %v975 = vmin.f32 %v968, %v969
        %v976 = vmin.f32 %v974, %v975
        %v977 = vlaneseq
        %v978 = vshrl.u32 %v977, 7
        %v979 = vsub.s32 0, %v978
        %v980 = vrot.slane %v976, %v979
        %vm981 = vcmp.eq.f32.partialorder %v929, %v980
        %vm982 = vcmp.eq.f32.partialorder %v936, %v980
        %vm983 = vcmp.eq.f32.partialorder %v943, %v980
        %vm984 = vcmp.eq.f32.partialorder %v950, %v980
        %vm985 = vcmp.eq.f32.partialorder %v957, %v980
        %vm986 = vcmp.eq.f32.partialorder %v964, %v980
        %v988 = vrot.slane %v654, 1
        %v989 = vrot.slane %v654, 2
        %v990 = vrot.slane %v654, 3
        %v991 = vrot.slane %v654, 4
        %v992 = vrot.slane %v654, 5
        %v999 = vsel %vm981, %v654, 6.0
        %v1000 = vsel %vm982, %v988, 6.0
        %v1001 = vsel %vm983, %v989, 6.0
        %v1002 = vsel %vm984, %v990, 6.0
        %v1003 = vsel %vm985, %v991, 6.0
        %v1004 = vsel %vm986, %v992, 6.0
        %v1005 = vsel %vm965, %v999, inf
        %v1006 = vsel %vm965, %v1000, inf
        %v1007 = vsel %vm965, %v1001, inf
        %v1008 = vsel %vm965, %v1002, inf
        %v1009 = vsel %vm965, %v1003, inf
        %v1010 = vmin.f32 %v1005, %v1009
        %v1011 = vsel %vm965, %v1004, inf
        %v1012 = vmin.f32 %v1006, %v1011
        %v1013 = vmin.f32 %v1010, %v1012
        %v1014 = vmin.f32 %v1007, %v1008
        %v1015 = vmin.f32 %v1013, %v1014
        %v1016 = vlaneseq
        %v1017 = vshrl.u32 %v1016, 7
        %v1018 = vsub.s32 0, %v1017
        %v1019 = vrot.slane %v1015, %v1018
        %vm1020 = vcmp.eq.f32.partialorder %v654, %v1019
        %v1021 = vsel %vm1020, 1, 0
        %v1022 = vcvt.s32.f32 %v1021
        %v1023 = vmul.f32 %v1022, %v648
        %v1024 = vsel %vm671, %v1023, 0.0
        %v1025 = vrot.slane %v1024, 4
        %v1026 = vadd.f32 %v1024, %v1025
        %v1027 = vrot.slane %v1026, 2
        %v1028 = vadd.f32 %v1026, %v1027
        %v1029 = vrot.slane %v1028, 1
        %v1030 = vadd.f32 %v1028, %v1029
        %v1031 = vsub.f32 %v1030, %v648
        %vm1032 = vcmp.lt.f32.partialorder %v976, 2.0
        %v1033 = vsub.f32 %v929, %v980
        %v1034 = vsub.f32 %v936, %v980
        %v1035 = vsub.f32 %v943, %v980
        %v1036 = vsub.f32 %v950, %v980
        %v1037 = vsub.f32 %v957, %v980
        %v1038 = vsub.f32 %v964, %v980
        %vm1039 = vcmp.gt.f32.partialorder %v1033, 0.2
        %vm1040 = vcmp.gt.f32.partialorder %v1034, 0.2
        %vm1041 = vcmp.gt.f32.partialorder %v1035, 0.2
        %vm1042 = vcmp.gt.f32.partialorder %v1036, 0.2
        %vm1043 = vcmp.gt.f32.partialorder %v1037, 0.2
        %vm1044 = vcmp.gt.f32.partialorder %v1038, 0.2
        %v1045 = vsel %vm1032, 1, 0
        %v1046 = vlaneseq
        %v1047 = vshrl.u32 %v1046, 7
        %v1048 = vsub.s32 0, %v1047
        %v1049 = vrot.slane %v1045, %v1048
        %vm1050 = vcmp.eq.s32.totalorder %v1049, 1
        %v1051 = vsel %vm1039, 1, 0
        %v1052 = vsel %vm1040, 1, 0
        %v1053 = vsel %vm1041, 1, 0
        %v1054 = vsel %vm1042, 1, 0
        %v1055 = vsel %vm1043, 1, 0
        %v1056 = vsel %vm1044, 1, 0
        %v1057 = vrot.slane %v1052, 7
        %vm1058 = vcmask 1041409
        %v1059 = vsel %vm1058, %v1057, %v1051
        %v1060 = vrot.slane %v1053, 6
        %vm1061 = vcmask 1042434
        %v1062 = vsel %vm1061, %v1060, %v1059
        %v1063 = vrot.slane %v1054, 5
        %vm1064 = vcmask 1043459
        %v1065 = vsel %vm1064, %v1063, %v1062
        %v1066 = vrot.slane %v1055, 4
        %vm1067 = vcmask 1044484
        %v1068 = vsel %vm1067, %v1066, %v1065
        %v1069 = vrot.slane %v1056, 3
        %vm1070 = vcmask 1045509
        %v1071 = vsel %vm1070, %v1069, %v1068
        %vm1072 = vcmp.ne.s32.totalorder %v1071, 0
        %vm1073 = vmand %vm1050, %vm1072
        %vm1074 = vcmp.lt.f32.partialorder %v1031, 0.2
        %vm1075 = vmand %vm1073, %vm1074
        %vm1076 = vcmp.gt.f32.partialorder %v684, 0.0
        %v1077 = vsel %vm1076, 1, 0
        %vm1078 = vcmp.eq.s32.totalorder %v1077, 1
        %vm1079 = vmand %vm1075, %vm1078
        %v1080 = vsel %vm1079, 1, 0
        %v1081 = vcvt.s32.f32 %v1080
        %v1082 = vsub.f32 0.2, %v1031
        %v1083 = vmul.f32 %v1081, %v1082
        %v1084 = vsel %vm671, %v1083, 0.0
        %v1085 = vrot.slane %v1084, 4
        %v1086 = vadd.f32 %v1084, %v1085
        %v1087 = vrot.slane %v1086, 2
        %v1088 = vadd.f32 %v1086, %v1087
        %v1089 = vrot.slane %v1088, 1
        %v1090 = vadd.f32 %v1088, %v1089
        %v1091 = vsel %vm671, %v1081, 0.0
        %v1092 = vrot.slane %v1091, 4
        %v1093 = vadd.f32 %v1091, %v1092
        %v1094 = vrot.slane %v1093, 2
        %v1095 = vadd.f32 %v1093, %v1094
        %v1096 = vrot.slane %v1095, 1
        %v1097 = vadd.f32 %v1095, %v1096
        %v1099 = vcombine.high %v1022, %v1022
        %v1101 = vunpack.c.l.s4 1966171168
        %v1102 = vunpack.c.0.s8 %v1101
        %v1103 = vlaneseq
        %v1104 = vshrl.u32 %v1103, 7
        %v1105 = vsub.s32 %v1102, %v1104
        %v1106 = vrot.slane %v1022, %v1105
        %v1108 = vunpack.c.l.s4 1966171168
        %v1109 = vunpack.c.0.s8 %v1108
        %v1110 = vlaneseq
        %v1111 = vshrl.u32 %v1110, 7
        %v1112 = vsub.s32 %v1109, %v1111
        %v1113 = vrot.slane %v1099, %v1112
        %v1114 = vcombine.high %v1106, %v1106
        %v1115 = vcombine.high %v1113, %v1113
        %v1117 = vunpack.c.l.s4 1966171168
        %v1118 = vunpack.c.0.s8 %v1117
        %v1119 = vlaneseq
        %v1120 = vshrl.u32 %v1119, 7
        %v1121 = vsub.s32 %v1118, %v1120
        %v1122 = vrot.slane %v1106, %v1121
        %v1124 = vunpack.c.l.s4 1966171168
        %v1125 = vunpack.c.0.s8 %v1124
        %v1126 = vlaneseq
        %v1127 = vshrl.u32 %v1126, 7
        %v1128 = vsub.s32 %v1125, %v1127
        %v1129 = vrot.slane %v1113, %v1128
        %v1131 = vunpack.c.l.s4 1966171168
        %v1132 = vunpack.c.0.s8 %v1131
        %v1133 = vlaneseq
        %v1134 = vshrl.u32 %v1133, 7
        %v1135 = vsub.s32 %v1132, %v1134
        %v1136 = vrot.slane %v1114, %v1135
        %v1138 = vunpack.c.l.s4 1966171168
        %v1139 = vunpack.c.0.s8 %v1138
        %v1140 = vlaneseq
        %v1141 = vshrl.u32 %v1140, 7
        %v1142 = vsub.s32 %v1139, %v1141
        %v1143 = vrot.slane %v1115, %v1142
        %v1144 = vcombine.high %v1122, %v1122
        %v1145 = vcombine.high %v1136, %v1136
        %v1146 = vlaneseq
        %v1147 = vshrl.u32 %v1146, 7
        %v1148 = vsub.s32 0, %v1147
        %v1149 = vrot.slane %v1122, %v1148
        %v1150 = vlaneseq
        %v1151 = vshrl.u32 %v1150, 7
        %v1152 = vsub.s32 0, %v1151
        %v1153 = vrot.slane %v1136, %v1152
        %v1154 = vlaneseq
        %v1155 = vshrl.u32 %v1154, 7
        %v1156 = vsub.s32 0, %v1155
        %v1157 = vrot.slane %v1144, %v1156
        %v1158 = vlaneseq
        %v1159 = vshrl.u32 %v1158, 7
        %v1160 = vsub.s32 0, %v1159
        %v1161 = vrot.slane %v1145, %v1160
        %v1162 = vlaneseq
        %v1163 = vshrl.u32 %v1162, 7
        %v1164 = vsub.s32 0, %v1163
        %v1165 = vrot.slane %v1129, %v1164
        %v1166 = vlaneseq
        %v1167 = vshrl.u32 %v1166, 7
        %v1168 = vsub.s32 0, %v1167
        %v1169 = vrot.slane %v1143, %v1168
        %v1176 = vmul.f32 %v1149, %v599
        %v1177 = vmul.f32 %v1149, %v600
        %v1178 = vmul.f32 %v1149, %v601
        %v1179 = vmul.f32 %v1149, %v602
        %v1180 = vmul.f32 %v1153, %v603
        %v1181 = vmul.f32 %v1153, %v604
        %v1182 = vmul.f32 %v1153, %v605
        %v1183 = vmul.f32 %v1153, %v606
        %v1184 = vmul.f32 %v1157, %v607
        %v1185 = vmul.f32 %v1157, %v608
        %v1186 = vmul.f32 %v1157, %v609
        %v1187 = vmul.f32 %v1157, %v610
        %v1188 = vmul.f32 %v1161, %v611
        %v1189 = vmul.f32 %v1161, %v612
        %v1190 = vmul.f32 %v1161, %v613
        %v1191 = vmul.f32 %v1161, %v614
        %v1192 = vmul.f32 %v1165, %v615
        %v1193 = vmul.f32 %v1165, %v616
        %v1194 = vmul.f32 %v1165, %v617
        %v1195 = vmul.f32 %v1165, %v618
        %v1196 = vmul.f32 %v1169, %v619
        %v1197 = vmul.f32 %v1169, %v620
        %v1198 = vmul.f32 %v1169, %v621
        %v1199 = vmul.f32 %v1169, %v622
        %v1200 = vadd.f32 %v1176, %v1180
        %v1201 = vadd.f32 %v1200, %v1184
        %v1202 = vadd.f32 %v1201, %v1188
        %v1203 = vadd.f32 %v1202, %v1192
        %v1204 = vadd.f32 %v1203, %v1196
        %v1205 = vadd.f32 %v1177, %v1181
        %v1206 = vadd.f32 %v1205, %v1185
        %v1207 = vadd.f32 %v1206, %v1189
        %v1208 = vadd.f32 %v1207, %v1193
        %v1209 = vadd.f32 %v1208, %v1197
        %v1210 = vadd.f32 %v1178, %v1182
        %v1211 = vadd.f32 %v1210, %v1186
        %v1212 = vadd.f32 %v1211, %v1190
        %v1213 = vadd.f32 %v1212, %v1194
        %v1214 = vadd.f32 %v1213, %v1198
        %v1215 = vsel %vm671, %v1179, 0.0
        %v1216 = vsel %vm671, %v1183, 0.0
        %v1217 = vadd.f32 %v1215, %v1216
        %v1218 = vsel %vm671, %v1187, 0.0
        %v1219 = vadd.f32 %v1217, %v1218
        %v1220 = vsel %vm671, %v1191, 0.0
        %v1221 = vadd.f32 %v1219, %v1220
        %v1222 = vsel %vm671, %v1195, 0.0
        %v1223 = vadd.f32 %v1221, %v1222
        %v1224 = vsel %vm671, %v1199, 0.0
        %v1225 = vadd.f32 %v1223, %v1224
        %v1226 = vmul.f32 %v1149, %v624
        %v1227 = vmul.f32 %v1149, %v625
        %v1228 = vmul.f32 %v1149, %v626
        %v1229 = vmul.f32 %v1149, %v627
        %v1230 = vmul.f32 %v1153, %v628
        %v1231 = vmul.f32 %v1153, %v629
        %v1232 = vmul.f32 %v1153, %v630
        %v1233 = vmul.f32 %v1153, %v631
        %v1234 = vmul.f32 %v1157, %v632
        %v1235 = vmul.f32 %v1157, %v633
        %v1236 = vmul.f32 %v1157, %v634
        %v1237 = vmul.f32 %v1157, %v635
        %v1238 = vmul.f32 %v1161, %v636
        %v1239 = vmul.f32 %v1161, %v637
        %v1240 = vmul.f32 %v1161, %v638
        %v1241 = vmul.f32 %v1161, %v639
        %v1242 = vmul.f32 %v1165, %v640
        %v1243 = vmul.f32 %v1165, %v641
        %v1244 = vmul.f32 %v1165, %v642
        %v1245 = vmul.f32 %v1165, %v643
        %v1246 = vmul.f32 %v1169, %v644
        %v1247 = vmul.f32 %v1169, %v645
        %v1248 = vmul.f32 %v1169, %v646
        %v1249 = vmul.f32 %v1169, %v647
        %v1250 = vadd.f32 %v1226, %v1230
        %v1251 = vadd.f32 %v1250, %v1234
        %v1252 = vadd.f32 %v1251, %v1238
        %v1253 = vadd.f32 %v1252, %v1242
        %v1254 = vadd.f32 %v1253, %v1246
        %v1255 = vadd.f32 %v1227, %v1231
        %v1256 = vadd.f32 %v1255, %v1235
        %v1257 = vadd.f32 %v1256, %v1239
        %v1258 = vadd.f32 %v1257, %v1243
        %v1259 = vadd.f32 %v1258, %v1247
        %v1260 = vadd.f32 %v1228, %v1232
        %v1261 = vadd.f32 %v1260, %v1236
        %v1262 = vadd.f32 %v1261, %v1240
        %v1263 = vadd.f32 %v1262, %v1244
        %v1264 = vadd.f32 %v1263, %v1248
        %v1265 = vsel %vm671, %v1229, 0.0
        %v1266 = vsel %vm671, %v1233, 0.0
        %v1267 = vadd.f32 %v1265, %v1266
        %v1268 = vsel %vm671, %v1237, 0.0
        %v1269 = vadd.f32 %v1267, %v1268
        %v1270 = vsel %vm671, %v1241, 0.0
        %v1271 = vadd.f32 %v1269, %v1270
        %v1272 = vsel %vm671, %v1245, 0.0
        %v1273 = vadd.f32 %v1271, %v1272
        %v1274 = vsel %vm671, %v1249, 0.0
        %v1275 = vadd.f32 %v1273, %v1274
        %v1276 = vmul.f32 %v586, %v684
        %v1277 = vmul.f32 %v587, %v684
        %v1278 = vmul.f32 %v588, %v684
        %v1279 = vmul.f32 %v589, %v684
        %v1280 = vsub.f32 %v1204, %v590
        %v1281 = vsub.f32 %v1209, %v591
        %v1282 = vsub.f32 %v1214, %v592
        %v1283 = vsub.f32 %v1225, %v593
        %v1284 = vand.u32 2147483647, %v1280
        %v1285 = vand.u32 2147483647, %v1281
        %v1286 = vand.u32 2147483647, %v1282
        %v1287 = vand.u32 2147483647, %v1283
        %vm1288 = vcmp.lt.f32.partialorder %v1284, 1.0
        %vm1289 = vcmp.lt.f32.partialorder %v1285, 1.0
        %vm1290 = vcmp.lt.f32.partialorder %v1286, 1.0
        %vm1291 = vcmp.lt.f32.partialorder %v1287, 1.0
        %v1292 = vmul.f32 %v1280, 0.5
        %v1293 = vmul.f32 %v1281, 0.5
        %v1294 = vmul.f32 %v1282, 0.5
        %v1295 = vmul.f32 %v1283, 0.5
        %v1296 = vmul.f32 %v1292, %v1280
        %v1297 = vmul.f32 %v1293, %v1281
        %v1298 = vmul.f32 %v1294, %v1282
        %v1299 = vmul.f32 %v1295, %v1283
        %v1300 = vsub.f32 %v1284, 0.5
        %v1301 = vsub.f32 %v1285, 0.5
        %v1302 = vsub.f32 %v1286, 0.5
        %v1303 = vsub.f32 %v1287, 0.5
        %v1304 = vsel %vm1288, %v1296, %v1300
        %v1305 = vsel %vm1289, %v1297, %v1301
        %v1306 = vsel %vm1290, %v1298, %v1302
        %v1307 = vsel %vm1291, %v1299, %v1303
        %v1308 = vsub.f32 %v1254, %v595
        %v1309 = vsub.f32 %v1259, %v596
        %v1310 = vsub.f32 %v1264, %v597
        %v1311 = vsub.f32 %v1275, %v598
        %v1312 = vand.u32 2147483647, %v1308
        %v1313 = vand.u32 2147483647, %v1309
        %v1314 = vand.u32 2147483647, %v1310
        %v1315 = vand.u32 2147483647, %v1311
        %vm1316 = vcmp.lt.f32.partialorder %v1312, 1.0
        %vm1317 = vcmp.lt.f32.partialorder %v1313, 1.0
        %vm1318 = vcmp.lt.f32.partialorder %v1314, 1.0
        %vm1319 = vcmp.lt.f32.partialorder %v1315, 1.0
        %v1320 = vmul.f32 %v1308, 0.5
        %v1321 = vmul.f32 %v1309, 0.5
        %v1322 = vmul.f32 %v1310, 0.5
        %v1323 = vmul.f32 %v1311, 0.5
        %v1324 = vmul.f32 %v1320, %v1308
        %v1325 = vmul.f32 %v1321, %v1309
        %v1326 = vmul.f32 %v1322, %v1310
        %v1327 = vmul.f32 %v1323, %v1311
        %v1328 = vsub.f32 %v1312, 0.5
        %v1329 = vsub.f32 %v1313, 0.5
        %v1330 = vsub.f32 %v1314, 0.5
        %v1331 = vsub.f32 %v1315, 0.5
        %v1332 = vsel %vm1316, %v1324, %v1328
        %v1333 = vsel %vm1317, %v1325, %v1329
        %v1334 = vsel %vm1318, %v1326, %v1330
        %v1335 = vsel %vm1319, %v1327, %v1331
        %v1336 = vadd.f32 %v1304, %v1332
        %v1337 = vadd.f32 %v1305, %v1333
        %v1338 = vadd.f32 %v1306, %v1334
        %v1339 = vadd.f32 %v1307, %v1335
        %v1340 = vmul.f32 %v1336, %v1276
        %v1341 = vmul.f32 %v1337, %v1277
        %v1342 = vmul.f32 %v1338, %v1278
        %v1343 = vmul.f32 %v1339, %v1279
        %v1344 = vadd.f32 %v1340, %v1341
        %v1345 = vadd.f32 %v1344, %v1342
        %v1346 = vsel %vm671, %v1343, 0.0
        %v1347 = vadd.f32 %v1345, %v1346
        %v1348 = vrot.slane %v1347, 4
        %v1349 = vadd.f32 %v1347, %v1348
        %v1350 = vrot.slane %v1349, 2
        %v1351 = vadd.f32 %v1349, %v1350
        %v1352 = vrot.slane %v1351, 1
        %v1353 = vadd.f32 %v1351, %v1352
        %v1354 = vadd.f32 %v1276, %v1277
        %v1355 = vadd.f32 %v1354, %v1278
        %v1356 = vsel %vm671, %v1279, 0.0
        %v1357 = vadd.f32 %v1355, %v1356
        %v1358 = vrot.slane %v1357, 4
        %v1359 = vadd.f32 %v1357, %v1358
        %v1360 = vrot.slane %v1359, 2
        %v1361 = vadd.f32 %v1359, %v1360
        %v1362 = vrot.slane %v1361, 1
        %v1363 = vadd.f32 %v1361, %v1362
        %1364 = vst [vmem:[%s581] sm:$0x1] %v1090
        %1365 = vst [vmem:[%s581 + $0x1] sm:$0x1] %v1097
        %1366 = vst [vmem:[%s581 + $0x2] sm:$0x1] %v1353
        %1367 = vst [vmem:[%s581 + $0x3] sm:$0x1] %v1363
        %s1368 = sand.u32 %s130, 1
        %s1369 = scalar_lea.sflag [#allocation6], %s1368
        %s1370 = sand.u32 %s130, 1
        %s1371 = smul.addr %s1370, 4
        %s1372 = scalar_lea.vmem [#allocation5], %s1371
        // Predicated region
        $region151: #{tpu_custom_call.1} parent=137 // pred_check
          %p1373 = pneg %p140
        $region152: #{tpu_custom_call.1} parent=137 // pred_check_branch
          %1375 = sbr.rel (%p1373) target = $region154
        $region153: #{tpu_custom_call.1} parent=137 // pred_region
          %s1377 = ssub.s32 64, 64
          %1378 = vsyncadd %s1369, %s1377
          %s1379 = smul.addr %s18, 64
          %s1380 = scalar_lea.hbm %s4, %s1379
          %s1382 = sshll.u32 %s1372, 4
          %s1383 = int_to_ptr.vmem [resolvable:$true] %s1382
          %1385 = dma.vmem_to_hbm [thread:$0]  %s1383, 64, %s1380, %s1369
        $region154: #{tpu_custom_call.1} parent=137 // pred_fallthru
          _
      $region138: #{tpu_custom_call.1} parent=5 // pred_fallthru
        _
      %p1386 = scmp.le.s32.totalorder 2, %s13
      // Predicated region
      $region155: #{tpu_custom_call.1} parent=5 // pred_check
        %p1387 = pneg %p1386
      $region156: #{tpu_custom_call.1} parent=5 // pred_check_branch
        %1389 = sbr.rel (%p1387) target = $region158
      $region157: #{tpu_custom_call.1} parent=5 // pred_region
        %s1390 = ssub.s32 %s13, 2
        // Predicated region
        $region159: #{tpu_custom_call.1} parent=157 // pred_check
          %p1391 = pneg %p146
        $region160: #{tpu_custom_call.1} parent=157 // pred_check_branch
          %1393 = sbr.rel (%p1391) target = $region162
        $region161: #{tpu_custom_call.1} parent=157 // pred_region
          %s1394 = sand.u32 %s131, 1
          %s1395 = scalar_lea.sflag [#allocation6], %s1394
          %s1396 = sand.u32 %s131, 1
          %s1397 = smul.addr %s1396, 4
          %s1398 = scalar_lea.vmem [#allocation5], %s1397
          %1399 = dma.done %s1395, 64
        $region162: #{tpu_custom_call.1} parent=157 // pred_fallthru
          _
      $region158: #{tpu_custom_call.1} parent=5 // pred_fallthru
        _
    $region6: #{tpu_custom_call.1} parent=1 // loop_footer
      %s17 = sadd.s32 1, %s13
    $region7: #{tpu_custom_call.1} parent=1 // loop_footer_branch
      %12 = sbr.rel target = $region3
    $region8: #{tpu_custom_call.1} parent=1 // loop_exit
      _
    %1400 = vsyncpa [#allocation6], 1
    %s1401 = scalar_lea.sflag [#allocation6], 1
    %1402 = vsyncpa %s1401, 1

</llo_original>
